<compile_context>
chip_gen: v6e
topology: v6e:2x2x1
jax: 0.10.0
libtpu: 0.0.40
codegen_flags: <defaults>
</compile_context>

<pallas_src>
from functools import partial

import jax
import jax.numpy as jnp
from jax import lax
from jax.experimental import pallas as pl
from jax.experimental.pallas import tpu as pltpu  # noqa: F401  (kept for TPU-specific extensions)


# ----------------------------- Fused Pallas kernel ---------------------------

def fused_cross_attention_kernel(
    q_in_ref, kv_in_ref,
    qw_ref, qb_ref, kvw_ref, kvb_ref, pw_ref, pb_ref,
    o_ref, *, num_heads, scale, matmul_dtype):
    """Single-step fused CrossAttention (eval mode), batch folded into M.

    q_in:  (B, N_Q, E)            kv_in: (B, N_KV, E)   (key == value tokens)
    qw:    (E, E)   qb: (1, E)
    kvw:   (E, 2E)  kvb: (1, 2E)  (packed [k_w | v_w], [k_b | v_b])
    pw:    (E, E)   pb: (1, E)
    out:   (B, N_Q, E)
    """
    B, N_Q, E = q_in_ref.shape
    _, N_KV, _ = kv_in_ref.shape
    H = num_heads
    D = E // H

    # ---- Projections: batch folded into the M dimension (one MXU push each).
    q_tok = q_in_ref[...].reshape(B * N_Q, E).astype(matmul_dtype)
    kv_tok = kv_in_ref[...].reshape(B * N_KV, E).astype(matmul_dtype)

    q = jnp.dot(q_tok, qw_ref[...], preferred_element_type=jnp.float32) + qb_ref[...]
    kv = jnp.dot(kv_tok, kvw_ref[...], preferred_element_type=jnp.float32) + kvb_ref[...]

    q3 = q.reshape(B, N_Q, E)            # (B, N_Q, E)
    kv3 = kv.reshape(B, N_KV, 2 * E)     # (B, N_KV, 2E) = [K | V] along lanes

    # ---- Head-batched attention: leading batch dim = H*B (head-major).
    qh = jnp.concatenate(
        [q3[:, :, h * D:(h + 1) * D] for h in range(H)], axis=0)          # (H*B, N_Q, D)
    kh = jnp.concatenate(
        [kv3[:, :, h * D:(h + 1) * D] for h in range(H)], axis=0)         # (H*B, N_KV, D)
    vh = jnp.concatenate(
        [kv3[:, :, E + h * D:E + (h + 1) * D] for h in range(H)], axis=0) # (H*B, N_KV, D)

    # QK^T contracting the last dims of both operands (flash-attention pattern,
    # no materialized K transpose).
    s = jnp.einsum("bqd,bkd->bqk", qh.astype(matmul_dtype), kh.astype(matmul_dtype),
                   preferred_element_type=jnp.float32) * scale            # (H*B, N_Q, N_KV)

    # One batched softmax chain (stats in f32); reciprocal on the EUP.
    s = s - jnp.max(s, axis=-1, keepdims=True)
    p = jnp.exp(s)
    p = p * pl.reciprocal(jnp.sum(p, axis=-1, keepdims=True), approx=True)

    ctx = jnp.einsum("bqk,bkd->bqd", p.astype(matmul_dtype), vh.astype(matmul_dtype),
                     preferred_element_type=jnp.float32)                  # (H*B, N_Q, D)

    # Reassemble lane-dense (B, N_Q, E) in head-major lane order.
    ctx_full = jnp.concatenate(
        [ctx[h * B:(h + 1) * B] for h in range(H)], axis=-1)              # (B, N_Q, E)

    # ---- Output projection; dropouts are identity (eval mode).
    out = jnp.dot(ctx_full.reshape(B * N_Q, E).astype(matmul_dtype), pw_ref[...],
                  preferred_element_type=jnp.float32) + pb_ref[...]
    o_ref[...] = out.reshape(B, N_Q, E).astype(o_ref.dtype)


def cross_attention_forward(params, query, key_value, num_heads):
    """Fused CrossAttention forward (key == value, as used by BiScaleCrossViT).

    One pallas_call, no grid: activations + all weights live in VMEM for the
    single step, nothing round-trips HBM.
    """
    B, N_Q, E = query.shape
    _, N_KV, E_kv = key_value.shape
    assert E_kv == E and E % num_heads == 0
    head_dim = E // num_heads
    scale = head_dim ** (-0.5)

    # bf16 MXU operands (f32 accumulation) once the matmuls are big enough to
    # matter; tiny/overhead-bound sizes stay f32 for a tight correctness check.
    matmul_dtype = jnp.bfloat16 if E >= 256 else jnp.float32

    # Pack K|V projection into one (E, 2E) weight (done once, outside the kernel).
    kv_w = jnp.concatenate([params["k_w"], params["v_w"]], axis=1)
    kv_b = jnp.concatenate([params["k_b"], params["v_b"]], axis=0).reshape(1, 2 * E)

    kernel = partial(fused_cross_attention_kernel,
                     num_heads=num_heads, scale=scale, matmul_dtype=matmul_dtype)

    return pl.pallas_call(
        kernel,
        out_shape=jax.ShapeDtypeStruct((B, N_Q, E), query.dtype),
    )(
        query, key_value,
        params["q_w"].astype(matmul_dtype), params["q_b"].reshape(1, E),
        kv_w.astype(matmul_dtype), kv_b,
        params["proj_w"].astype(matmul_dtype), params["proj_b"].reshape(1, E),
    )


# ----------------------------- Params & reference ----------------------------

def init_cross_attention_params(key, embed_dim):
    """Deterministic init mirroring nn.Linear defaults (uniform(+-1/sqrt(fan_in)))."""
    bound = 1.0 / (embed_dim ** 0.5)
    names = ["q", "k", "v", "proj"]
    keys = jax.random.split(key, 2 * len(names))
    params = {}
    for i, name in enumerate(names):
        # Stored as (E_in, E_out) so forward is x @ W + b.
        params[f"{name}_w"] = jax.random.uniform(
            keys[2 * i], (embed_dim, embed_dim), jnp.float32, -bound, bound)
        params[f"{name}_b"] = jax.random.uniform(
            keys[2 * i + 1], (embed_dim,), jnp.float32, -bound, bound)
    return params


def cross_attention_reference(params, query, key, value, num_heads):
    """Pure-JAX reference matching the PyTorch CrossAttention (eval mode)."""
    B, N_Q, E = query.shape
    N_K = key.shape[1]
    head_dim = E // num_heads
    scale = head_dim ** (-0.5)
    q = (query @ params["q_w"] + params["q_b"]).reshape(B, N_Q, num_heads, head_dim)
    k = (key @ params["k_w"] + params["k_b"]).reshape(B, N_K, num_heads, head_dim)
    v = (value @ params["v_w"] + params["v_b"]).reshape(B, N_K, num_heads, head_dim)
    q, k, v = (t.transpose(0, 2, 1, 3) for t in (q, k, v))
    attn = jax.nn.softmax(jnp.einsum("bhqd,bhkd->bhqk", q, k) * scale, axis=-1)
    x = jnp.einsum("bhqk,bhkd->bhqd", attn, v).transpose(0, 2, 1, 3).reshape(B, N_Q, E)
    return x @ params["proj_w"] + params["proj_b"]


# --------------------------------- Main --------------------------------------

if __name__ == "__main__":
    # Small shapes consistent with the module: embed_dim divisible by num_heads=6.
    B, N_Q, N_KV = 2, 8, 16
    embed_dim, num_heads = 96, 6

    root = jax.random.PRNGKey(0)
    k_params, k_q, k_kv = jax.random.split(root, 3)

    params = init_cross_attention_params(k_params, embed_dim)
    query = jax.random.normal(k_q, (B, N_Q, embed_dim), jnp.float32)
    # BiScaleCrossViT passes the same tensor as key and value.
    key_value = jax.random.normal(k_kv, (B, N_KV, embed_dim), jnp.float32)

    out = cross_attention_forward(params, query, key_value, num_heads)
    out = jax.block_until_ready(out)

    ref = cross_attention_reference(params, query, key_value, key_value, num_heads)
    assert out.shape == (B, N_Q, embed_dim)
    # Tolerance loosened (vs 1e-4) to account for the approx EUP reciprocal in
    # the softmax normalization; matmuls are exact f32 at this size.
    max_err = float(jnp.max(jnp.abs(out - ref)))
    assert jnp.allclose(out, ref, atol=2e-2, rtol=2e-2), (
        f"mismatch vs reference (max abs err {max_err})")

    print("KERNEL_OK")
</pallas_src>

<mosaic_0001>
module attributes {stable_mosaic.version = 11 : i64} {
  func.func @fused_cross_attention_kernel(%arg0: memref<2x8x96xf32, #tpu.memory_space<vmem>>, %arg1: memref<2x16x96xf32, #tpu.memory_space<vmem>>, %arg2: memref<96x96xf32, #tpu.memory_space<vmem>>, %arg3: memref<1x96xf32, #tpu.memory_space<vmem>>, %arg4: memref<96x192xf32, #tpu.memory_space<vmem>>, %arg5: memref<1x192xf32, #tpu.memory_space<vmem>>, %arg6: memref<96x96xf32, #tpu.memory_space<vmem>>, %arg7: memref<1x96xf32, #tpu.memory_space<vmem>>, %arg8: memref<2x8x96xf32, #tpu.memory_space<vmem>>) attributes {dimension_semantics = [], scalar_prefetch = 0 : i64, scratch_operands = 0 : i64, tpu.core_type = #tpu.core_type<tc>} {
    %c0 = arith.constant 0 : index
    %c0_0 = arith.constant 0 : index
    %c0_1 = arith.constant 0 : index
    %0 = vector.load %arg0[%c0, %c0_0, %c0_1] : memref<2x8x96xf32, #tpu.memory_space<vmem>>, vector<2x8x96xf32>
    %1 = vector.shape_cast %0 : vector<2x8x96xf32> to vector<16x96xf32>
    %c0_2 = arith.constant 0 : index
    %c0_3 = arith.constant 0 : index
    %c0_4 = arith.constant 0 : index
    %2 = vector.load %arg1[%c0_2, %c0_3, %c0_4] : memref<2x16x96xf32, #tpu.memory_space<vmem>>, vector<2x16x96xf32>
    %3 = vector.shape_cast %2 : vector<2x16x96xf32> to vector<32x96xf32>
    %c0_5 = arith.constant 0 : index
    %c0_6 = arith.constant 0 : index
    %4 = vector.load %arg2[%c0_5, %c0_6] : memref<96x96xf32, #tpu.memory_space<vmem>>, vector<96x96xf32>
    %cst = arith.constant dense<0.000000e+00> : vector<16x96xf32>
    %5 = tpu.matmul %1, %4, %cst {dimension_numbers = #tpu.dot_dimension_numbers<[1], [0], [0], [1], [0, 0, 1, 1], [], []>} : vector<16x96xf32>, vector<96x96xf32>, vector<16x96xf32> -> vector<16x96xf32>
    %c0_7 = arith.constant 0 : index
    %c0_8 = arith.constant 0 : index
    %6 = vector.load %arg3[%c0_7, %c0_8] : memref<1x96xf32, #tpu.memory_space<vmem>>, vector<1x96xf32>
    %7 = vector.broadcast %6 : vector<1x96xf32> to vector<16x96xf32>
    %8 = arith.addf %5, %7 : vector<16x96xf32>
    %c0_9 = arith.constant 0 : index
    %c0_10 = arith.constant 0 : index
    %9 = vector.load %arg4[%c0_9, %c0_10] : memref<96x192xf32, #tpu.memory_space<vmem>>, vector<96x192xf32>
    %cst_11 = arith.constant dense<0.000000e+00> : vector<32x192xf32>
    %10 = tpu.matmul %3, %9, %cst_11 {dimension_numbers = #tpu.dot_dimension_numbers<[1], [0], [0], [1], [0, 0, 1, 1], [], []>} : vector<32x96xf32>, vector<96x192xf32>, vector<32x192xf32> -> vector<32x192xf32>
    %c0_12 = arith.constant 0 : index
    %c0_13 = arith.constant 0 : index
    %11 = vector.load %arg5[%c0_12, %c0_13] : memref<1x192xf32, #tpu.memory_space<vmem>>, vector<1x192xf32>
    %12 = vector.broadcast %11 : vector<1x192xf32> to vector<32x192xf32>
    %13 = arith.addf %10, %12 : vector<32x192xf32>
    %14 = vector.shape_cast %8 : vector<16x96xf32> to vector<2x8x96xf32>
    %15 = vector.shape_cast %13 : vector<32x192xf32> to vector<2x16x192xf32>
    %16 = vector.extract_strided_slice %14 {offsets = [0, 0, 0], sizes = [2, 8, 16], strides = [1, 1, 1]} : vector<2x8x96xf32> to vector<2x8x16xf32>
    %17 = vector.extract_strided_slice %14 {offsets = [0, 0, 16], sizes = [2, 8, 16], strides = [1, 1, 1]} : vector<2x8x96xf32> to vector<2x8x16xf32>
    %18 = vector.extract_strided_slice %14 {offsets = [0, 0, 32], sizes = [2, 8, 16], strides = [1, 1, 1]} : vector<2x8x96xf32> to vector<2x8x16xf32>
    %19 = vector.extract_strided_slice %14 {offsets = [0, 0, 48], sizes = [2, 8, 16], strides = [1, 1, 1]} : vector<2x8x96xf32> to vector<2x8x16xf32>
    %20 = vector.extract_strided_slice %14 {offsets = [0, 0, 64], sizes = [2, 8, 16], strides = [1, 1, 1]} : vector<2x8x96xf32> to vector<2x8x16xf32>
    %21 = vector.extract_strided_slice %14 {offsets = [0, 0, 80], sizes = [2, 8, 16], strides = [1, 1, 1]} : vector<2x8x96xf32> to vector<2x8x16xf32>
    %22 = tpu.concatenate %16, %17, %18, %19, %20, %21 in 0 : vector<2x8x16xf32>, vector<2x8x16xf32>, vector<2x8x16xf32>, vector<2x8x16xf32>, vector<2x8x16xf32>, vector<2x8x16xf32> -> vector<12x8x16xf32>
    %23 = vector.extract_strided_slice %15 {offsets = [0, 0, 0], sizes = [2, 16, 16], strides = [1, 1, 1]} : vector<2x16x192xf32> to vector<2x16x16xf32>
    %24 = vector.extract_strided_slice %15 {offsets = [0, 0, 16], sizes = [2, 16, 16], strides = [1, 1, 1]} : vector<2x16x192xf32> to vector<2x16x16xf32>
    %25 = vector.extract_strided_slice %15 {offsets = [0, 0, 32], sizes = [2, 16, 16], strides = [1, 1, 1]} : vector<2x16x192xf32> to vector<2x16x16xf32>
    %26 = vector.extract_strided_slice %15 {offsets = [0, 0, 48], sizes = [2, 16, 16], strides = [1, 1, 1]} : vector<2x16x192xf32> to vector<2x16x16xf32>
    %27 = vector.extract_strided_slice %15 {offsets = [0, 0, 64], sizes = [2, 16, 16], strides = [1, 1, 1]} : vector<2x16x192xf32> to vector<2x16x16xf32>
    %28 = vector.extract_strided_slice %15 {offsets = [0, 0, 80], sizes = [2, 16, 16], strides = [1, 1, 1]} : vector<2x16x192xf32> to vector<2x16x16xf32>
    %29 = tpu.concatenate %23, %24, %25, %26, %27, %28 in 0 : vector<2x16x16xf32>, vector<2x16x16xf32>, vector<2x16x16xf32>, vector<2x16x16xf32>, vector<2x16x16xf32>, vector<2x16x16xf32> -> vector<12x16x16xf32>
    %30 = vector.extract_strided_slice %15 {offsets = [0, 0, 96], sizes = [2, 16, 16], strides = [1, 1, 1]} : vector<2x16x192xf32> to vector<2x16x16xf32>
    %31 = vector.extract_strided_slice %15 {offsets = [0, 0, 112], sizes = [2, 16, 16], strides = [1, 1, 1]} : vector<2x16x192xf32> to vector<2x16x16xf32>
    %32 = vector.extract_strided_slice %15 {offsets = [0, 0, 128], sizes = [2, 16, 16], strides = [1, 1, 1]} : vector<2x16x192xf32> to vector<2x16x16xf32>
    %33 = vector.extract_strided_slice %15 {offsets = [0, 0, 144], sizes = [2, 16, 16], strides = [1, 1, 1]} : vector<2x16x192xf32> to vector<2x16x16xf32>
    %34 = vector.extract_strided_slice %15 {offsets = [0, 0, 160], sizes = [2, 16, 16], strides = [1, 1, 1]} : vector<2x16x192xf32> to vector<2x16x16xf32>
    %35 = vector.extract_strided_slice %15 {offsets = [0, 0, 176], sizes = [2, 16, 16], strides = [1, 1, 1]} : vector<2x16x192xf32> to vector<2x16x16xf32>
    %36 = tpu.concatenate %30, %31, %32, %33, %34, %35 in 0 : vector<2x16x16xf32>, vector<2x16x16xf32>, vector<2x16x16xf32>, vector<2x16x16xf32>, vector<2x16x16xf32>, vector<2x16x16xf32> -> vector<12x16x16xf32>
    "tpu.trace_start"() <{level = 10 : i32, message = "bqd,bkd->bqk"}> : () -> ()
    %cst_14 = arith.constant dense<0.000000e+00> : vector<12x8x16xf32>
    %37 = tpu.matmul %22, %29, %cst_14 {dimension_numbers = #tpu.dot_dimension_numbers<[2], [2], [1], [1], [0, 0, 0, 1, 1, 1], [0], [0]>} : vector<12x8x16xf32>, vector<12x16x16xf32>, vector<12x8x16xf32> -> vector<12x8x16xf32>
    "tpu.trace_stop"() : () -> ()
    %cst_15 = arith.constant 2.500000e-01 : f32
    %38 = vector.broadcast %cst_15 : f32 to vector<12x8x16xf32>
    %39 = arith.mulf %37, %38 : vector<12x8x16xf32>
    %cst_16 = arith.constant dense<0xFF800000> : vector<12x8xf32>
    %40 = vector.multi_reduction <maximumf>, %39, %cst_16 [2] : vector<12x8x16xf32> to vector<12x8xf32>
    %41 = vector.shape_cast %40 : vector<12x8xf32> to vector<12x8x1xf32>
    %42 = vector.broadcast %41 : vector<12x8x1xf32> to vector<12x8x16xf32>
    %43 = arith.subf %39, %42 : vector<12x8x16xf32>
    %44 = math.exp %43 : vector<12x8x16xf32>
    %cst_17 = arith.constant dense<0.000000e+00> : vector<12x8xf32>
    %45 = vector.multi_reduction <add>, %44, %cst_17 [2] : vector<12x8x16xf32> to vector<12x8xf32>
    %46 = vector.shape_cast %45 : vector<12x8xf32> to vector<12x8x1xf32>
    %47 = tpu.reciprocal %46 {approx = true} : vector<12x8x1xf32> -> vector<12x8x1xf32>
    %48 = vector.broadcast %47 : vector<12x8x1xf32> to vector<12x8x16xf32>
    %49 = arith.mulf %44, %48 : vector<12x8x16xf32>
    "tpu.trace_start"() <{level = 10 : i32, message = "bqk,bkd->bqd"}> : () -> ()
    %cst_18 = arith.constant dense<0.000000e+00> : vector<12x8x16xf32>
    %50 = tpu.matmul %49, %36, %cst_18 {dimension_numbers = #tpu.dot_dimension_numbers<[2], [1], [1], [2], [0, 0, 0, 1, 1, 2], [0], [0]>} : vector<12x8x16xf32>, vector<12x16x16xf32>, vector<12x8x16xf32> -> vector<12x8x16xf32>
    "tpu.trace_stop"() : () -> ()
    %51 = vector.extract_strided_slice %50 {offsets = [0, 0, 0], sizes = [2, 8, 16], strides = [1, 1, 1]} : vector<12x8x16xf32> to vector<2x8x16xf32>
    %52 = vector.extract_strided_slice %50 {offsets = [2, 0, 0], sizes = [2, 8, 16], strides = [1, 1, 1]} : vector<12x8x16xf32> to vector<2x8x16xf32>
    %53 = vector.extract_strided_slice %50 {offsets = [4, 0, 0], sizes = [2, 8, 16], strides = [1, 1, 1]} : vector<12x8x16xf32> to vector<2x8x16xf32>
    %54 = vector.extract_strided_slice %50 {offsets = [6, 0, 0], sizes = [2, 8, 16], strides = [1, 1, 1]} : vector<12x8x16xf32> to vector<2x8x16xf32>
    %55 = vector.extract_strided_slice %50 {offsets = [8, 0, 0], sizes = [2, 8, 16], strides = [1, 1, 1]} : vector<12x8x16xf32> to vector<2x8x16xf32>
    %56 = vector.extract_strided_slice %50 {offsets = [10, 0, 0], sizes = [2, 8, 16], strides = [1, 1, 1]} : vector<12x8x16xf32> to vector<2x8x16xf32>
    %57 = tpu.concatenate %51, %52, %53, %54, %55, %56 in 2 : vector<2x8x16xf32>, vector<2x8x16xf32>, vector<2x8x16xf32>, vector<2x8x16xf32>, vector<2x8x16xf32>, vector<2x8x16xf32> -> vector<2x8x96xf32>
    %58 = vector.shape_cast %57 : vector<2x8x96xf32> to vector<16x96xf32>
    %c0_19 = arith.constant 0 : index
    %c0_20 = arith.constant 0 : index
    %59 = vector.load %arg6[%c0_19, %c0_20] : memref<96x96xf32, #tpu.memory_space<vmem>>, vector<96x96xf32>
    %cst_21 = arith.constant dense<0.000000e+00> : vector<16x96xf32>
    %60 = tpu.matmul %58, %59, %cst_21 {dimension_numbers = #tpu.dot_dimension_numbers<[1], [0], [0], [1], [0, 0, 1, 1], [], []>} : vector<16x96xf32>, vector<96x96xf32>, vector<16x96xf32> -> vector<16x96xf32>
    %c0_22 = arith.constant 0 : index
    %c0_23 = arith.constant 0 : index
    %61 = vector.load %arg7[%c0_22, %c0_23] : memref<1x96xf32, #tpu.memory_space<vmem>>, vector<1x96xf32>
    %62 = vector.broadcast %61 : vector<1x96xf32> to vector<16x96xf32>
    %63 = arith.addf %60, %62 : vector<16x96xf32>
    %64 = vector.shape_cast %63 : vector<16x96xf32> to vector<2x8x96xf32>
    %c0_24 = arith.constant 0 : index
    %c0_25 = arith.constant 0 : index
    %c0_26 = arith.constant 0 : index
    %65 = vector.load %arg8[%c0_24, %c0_25, %c0_26] : memref<2x8x96xf32, #tpu.memory_space<vmem>>, vector<2x8x96xf32>
    tpu.vector_store %arg8[%c0_24, %c0_25, %c0_26], %64 {strides = array<i32>} : memref<2x8x96xf32, #tpu.memory_space<vmem>>, vector<2x8x96xf32>,
    return
  }
}

</mosaic_0001>

<llo_original>
// kernel: tpu_custom_call.1
$region0: #{tpu_custom_call.1}
  #allocation0 [shape = 'u32[]', space=smem, size = 0x4, offset = 0x4, fixed_abs, tag = 'smem constant byte address 0x4 - core index']
  #allocation1 [shape = 'u32[144,128]{1,0:T(1,128)}', space=vmem, size = 0x12000, scoped, tag = 'internal scratch']
  %s0 = inlined_call_operand.hbm [shape: f32[2,8,96], index: 0, kind: input, shape index: {}]
  %s1 = inlined_call_operand.hbm [shape: f32[2,16,96], index: 1, kind: input, shape index: {}]
  %s2 = inlined_call_operand.hbm [shape: f32[96,96], index: 2, kind: input, shape index: {}]
  %s3 = inlined_call_operand.vmem [shape: f32[1,96], index: 3, kind: input, shape index: {}]
  %s4 = inlined_call_operand.hbm [shape: f32[96,192], index: 4, kind: input, shape index: {}]
  %s5 = inlined_call_operand.vmem [shape: f32[1,192], index: 5, kind: input, shape index: {}]
  %s6 = inlined_call_operand.hbm [shape: f32[96,96], index: 6, kind: input, shape index: {}]
  %s7 = inlined_call_operand.vmem [shape: f32[1,96], index: 7, kind: input, shape index: {}]
  %s8 = inlined_call_operand.hbm [shape: f32[2,8,96], index: 8, kind: output, shape index: {}]
  %s9 = sld [smem:[#allocation0]]
  $region62: #{tpu_custom_call.1} parent=0
    _
  %s11 = ssub.s32 1, %s9
  %s12 = scalar_select 0, %s11, %s9
  $region1: #{tpu_custom_call.1} parent=0
    #allocation2 [shape = 'u8[8192]{0}', space=vmem, size = 0x2000, scoped, tag = 'input window, operand 0, single buffered']
    #allocation3 [shape = 's32[1]{0}', space=sflag, size = 0x4, scoped, tag = 'scoped memory for tpu_custom_call.1']
    #allocation4 [shape = 's32[1]{0}', space=sflag, size = 0x4, scoped, tag = 'scoped memory for tpu_custom_call.1']
    #allocation5 [shape = 'u8[16384]{0}', space=vmem, size = 0x4000, scoped, tag = 'input window, operand 1, single buffered']
    #allocation6 [shape = 's32[1]{0}', space=sflag, size = 0x4, scoped, tag = 'scoped memory for tpu_custom_call.1']
    #allocation7 [shape = 'u8[49152]{0}', space=vmem, size = 0xc000, scoped, tag = 'input window, operand 2, single buffered']
    #allocation8 [shape = 'u8[98304]{0}', space=vmem, size = 0x18000, scoped, tag = 'input window, operand 4, single buffered']
    #allocation9 [shape = 's32[1]{0}', space=sflag, size = 0x4, scoped, tag = 'scoped memory for tpu_custom_call.1']
    #allocation10 [shape = 'u8[49152]{0}', space=vmem, size = 0xc000, scoped, tag = 'input window, operand 6, single buffered']
    #allocation11 [shape = 'u8[8192]{0}', space=vmem, size = 0x2000, scoped, tag = 'output window, operand 0, single buffered']
    %13 = vsyncpa [#allocation3], 0
    %14 = vsyncpa [#allocation6], 0
    %15 = vsyncpa [#allocation9], 0
    %16 = vsyncpa [#allocation4], 0
    // Predicated region
    $region2: #{tpu_custom_call.1} parent=1 // pred_check
      _
    $region3: #{tpu_custom_call.1} parent=1 // pred_check_branch
      %18 = sbr.rel (0) target = $region5
    $region4: #{tpu_custom_call.1} parent=1 // pred_region
      %s20 = ssub.s32 256, 256
      %21 = vsyncadd [#allocation3], %s20
      %s22 = sshll.u32 [#allocation2], 4
      %s23 = int_to_ptr.vmem [resolvable:$true] %s22
      %28 = dma.hbm_to_vmem [thread:$0]  %s0, 256, %s23, [#allocation3], 128, 128, 8
    $region5: #{tpu_custom_call.1} parent=1 // pred_fallthru
      _
    // Predicated region
    $region6: #{tpu_custom_call.1} parent=1 // pred_check
      _
    $region7: #{tpu_custom_call.1} parent=1 // pred_check_branch
      %30 = sbr.rel (0) target = $region9
    $region8: #{tpu_custom_call.1} parent=1 // pred_region
      %s32 = ssub.s32 512, 512
      %33 = vsyncadd [#allocation6], %s32
      %s34 = sshll.u32 [#allocation5], 4
      %s35 = int_to_ptr.vmem [resolvable:$true] %s34
      %40 = dma.hbm_to_vmem [thread:$0]  %s1, 512, %s35, [#allocation6], 128, 128, 8
    $region9: #{tpu_custom_call.1} parent=1 // pred_fallthru
      _
    // Predicated region
    $region10: #{tpu_custom_call.1} parent=1 // pred_check
      _
    $region11: #{tpu_custom_call.1} parent=1 // pred_check_branch
      %42 = sbr.rel (0) target = $region13
    $region12: #{tpu_custom_call.1} parent=1 // pred_region
      %s44 = ssub.s32 1536, 1536
      %45 = vsyncadd [#allocation6], %s44
      %s46 = sshll.u32 [#allocation7], 4
      %s47 = int_to_ptr.vmem [resolvable:$true] %s46
      %52 = dma.hbm_to_vmem [thread:$0]  %s2, 1536, %s47, [#allocation6], 128, 128, 8
    $region13: #{tpu_custom_call.1} parent=1 // pred_fallthru
      _
    // Predicated region
    $region14: #{tpu_custom_call.1} parent=1 // pred_check
      _
    $region15: #{tpu_custom_call.1} parent=1 // pred_check_branch
      %54 = sbr.rel (0) target = $region17
    $region16: #{tpu_custom_call.1} parent=1 // pred_region
      _
    $region17: #{tpu_custom_call.1} parent=1 // pred_fallthru
      _
    // Predicated region
    $region18: #{tpu_custom_call.1} parent=1 // pred_check
      _
    $region19: #{tpu_custom_call.1} parent=1 // pred_check_branch
      %56 = sbr.rel (0) target = $region21
    $region20: #{tpu_custom_call.1} parent=1 // pred_region
      %s58 = ssub.s32 3072, 3072
      %59 = vsyncadd [#allocation9], %s58
      %s60 = sshll.u32 [#allocation8], 4
      %s61 = int_to_ptr.vmem [resolvable:$true] %s60
      %66 = dma.hbm_to_vmem [thread:$0]  %s4, 3072, %s61, [#allocation9], 256, 256, 16
    $region21: #{tpu_custom_call.1} parent=1 // pred_fallthru
      _
    // Predicated region
    $region22: #{tpu_custom_call.1} parent=1 // pred_check
      _
    $region23: #{tpu_custom_call.1} parent=1 // pred_check_branch
      %68 = sbr.rel (0) target = $region25
    $region24: #{tpu_custom_call.1} parent=1 // pred_region
      _
    $region25: #{tpu_custom_call.1} parent=1 // pred_fallthru
      _
    // Predicated region
    $region26: #{tpu_custom_call.1} parent=1 // pred_check
      _
    $region27: #{tpu_custom_call.1} parent=1 // pred_check_branch
      %70 = sbr.rel (0) target = $region29
    $region28: #{tpu_custom_call.1} parent=1 // pred_region
      %s72 = ssub.s32 1536, 1536
      %73 = vsyncadd [#allocation9], %s72
      %s74 = sshll.u32 [#allocation10], 4
      %s75 = int_to_ptr.vmem [resolvable:$true] %s74
      %80 = dma.hbm_to_vmem [thread:$0]  %s6, 1536, %s75, [#allocation9], 128, 128, 8
    $region29: #{tpu_custom_call.1} parent=1 // pred_fallthru
      _
    // Predicated region
    $region30: #{tpu_custom_call.1} parent=1 // pred_check
      _
    $region31: #{tpu_custom_call.1} parent=1 // pred_check_branch
      %82 = sbr.rel (0) target = $region33
    $region32: #{tpu_custom_call.1} parent=1 // pred_region
      _
    $region33: #{tpu_custom_call.1} parent=1 // pred_fallthru
      _
    // Predicated region
    $region34: #{tpu_custom_call.1} parent=1 // pred_check
      _
    $region35: #{tpu_custom_call.1} parent=1 // pred_check_branch
      %84 = sbr.rel (0) target = $region37
    $region36: #{tpu_custom_call.1} parent=1 // pred_region
      %85 = dma.done [#allocation3], 256
    $region37: #{tpu_custom_call.1} parent=1 // pred_fallthru
      _
    // Predicated region
    $region38: #{tpu_custom_call.1} parent=1 // pred_check
      _
    $region39: #{tpu_custom_call.1} parent=1 // pred_check_branch
      %87 = sbr.rel (0) target = $region41
    $region40: #{tpu_custom_call.1} parent=1 // pred_region
      %88 = dma.done [#allocation6], 512
    $region41: #{tpu_custom_call.1} parent=1 // pred_fallthru
      _
    // Predicated region
    $region42: #{tpu_custom_call.1} parent=1 // pred_check
      _
    $region43: #{tpu_custom_call.1} parent=1 // pred_check_branch
      %90 = sbr.rel (0) target = $region45
    $region44: #{tpu_custom_call.1} parent=1 // pred_region
      %91 = dma.done [#allocation6], 1536
    $region45: #{tpu_custom_call.1} parent=1 // pred_fallthru
      _
    // Predicated region
    $region46: #{tpu_custom_call.1} parent=1 // pred_check
      _
    $region47: #{tpu_custom_call.1} parent=1 // pred_check_branch
      %93 = sbr.rel (0) target = $region49
    $region48: #{tpu_custom_call.1} parent=1 // pred_region
      %94 = dma.done [#allocation9], 3072
    $region49: #{tpu_custom_call.1} parent=1 // pred_fallthru
      _
    // Predicated region
    $region50: #{tpu_custom_call.1} parent=1 // pred_check
      _
    $region51: #{tpu_custom_call.1} parent=1 // pred_check_branch
      %96 = sbr.rel (0) target = $region53
    $region52: #{tpu_custom_call.1} parent=1 // pred_region
      %97 = dma.done [#allocation9], 1536
    $region53: #{tpu_custom_call.1} parent=1 // pred_fallthru
      _
    %v98 = vld [vmem:[#allocation2] sm:$0xff]
    %v99 = vld [vmem:[#allocation2 + $0x8] sm:$0xff]
    %v100 = vld [vmem:[#allocation5] sm:$0xff]
    %v101 = vld [vmem:[#allocation5 + $0x8] sm:$0xff]
    %v102 = vld [vmem:[#allocation5 + $0x10] sm:$0xff]
    %v103 = vld [vmem:[#allocation5 + $0x18] sm:$0xff]
    %v104 = vld [vmem:[#allocation7] sm:$0xff]
    %v105 = vld [vmem:[#allocation7 + $0x8] sm:$0xff]
    %v106 = vld [vmem:[#allocation7 + $0x10] sm:$0xff]
    %v107 = vld [vmem:[#allocation7 + $0x18] sm:$0xff]
    %v108 = vld [vmem:[#allocation7 + $0x20] sm:$0xff]
    %v109 = vld [vmem:[#allocation7 + $0x28] sm:$0xff]
    %v110 = vld [vmem:[#allocation7 + $0x30] sm:$0xff]
    %v111 = vld [vmem:[#allocation7 + $0x38] sm:$0xff]
    %v112 = vld [vmem:[#allocation7 + $0x40] sm:$0xff]
    %v113 = vld [vmem:[#allocation7 + $0x48] sm:$0xff]
    %v114 = vld [vmem:[#allocation7 + $0x50] sm:$0xff]
    %v115 = vld [vmem:[#allocation7 + $0x58] sm:$0xff]
    %v116 = vld [vmem:[%s3] sm:$0x1]
    %v118 = vlaneseq
    %v119 = vshrl.u32 %v118, 7
    %v120 = vsub.s32 0, %v119
    %v121 = vrot.slane %v116, %v120
    %vm123 = vcmask 785408
    %v125 = vsel %vm123, %v98, 0
    %v128 = vsel %vm123, %v99, 0
    %130 = vmatprep.subr.mxu0 0.0
    %131 = vmatpush1.msra.mxu0 0.0
    %132 = vmatprep.subr.mxu0 0.0
    %133 = vmatpush1.msra.mxu0 0.0
    %134 = vmatprep.subr.mxu0 0.0
    %135 = vmatpush1.msra.mxu0 0.0
    %136 = vmatprep.subr.mxu0 0.0
    %137 = vmatpush1.msra.mxu0 0.0
    %138 = vmatprep.subr.mxu0 0.0
    %139 = vmatpush1.msra.mxu0 %v115
    %140 = vmatprep.subr.mxu0 0.0
    %141 = vmatpush1.msra.mxu0 %v114
    %142 = vmatprep.subr.mxu0 0.0
    %143 = vmatpush1.msra.mxu0 %v113
    %144 = vmatprep.subr.mxu0 0.0
    %145 = vmatpush1.msra.mxu0 %v112
    %146 = vmatprep.subr.mxu0 0.0
    %147 = vmatpush1.msra.mxu0 %v111
    %148 = vmatprep.subr.mxu0 0.0
    %149 = vmatpush1.msra.mxu0 %v110
    %150 = vmatprep.subr.mxu0 0.0
    %151 = vmatpush1.msra.mxu0 %v109
    %152 = vmatprep.subr.mxu0 0.0
    %153 = vmatpush1.msra.mxu0 %v108
    %154 = vmatprep.subr.mxu0 0.0
    %155 = vmatpush1.msra.mxu0 %v107
    %156 = vmatprep.subr.mxu0 0.0
    %157 = vmatpush1.msra.mxu0 %v106
    %158 = vmatprep.subr.mxu0 0.0
    %159 = vmatpush1.msra.mxu0 %v105
    %160 = vmatprep.subr.mxu0 0.0
    %161 = vmatpush1.msra.mxu0 %v104
    %162 = vmatprep.subr.mxu0 0.0
    %163 = vmatpush2.msra.mxu0 0.0
    %164 = vmatprep.subr.mxu0 0.0
    %165 = vmatpush2.msra.mxu0 0.0
    %166 = vmatprep.subr.mxu0 0.0
    %167 = vmatpush2.msra.mxu0 0.0
    %168 = vmatprep.subr.mxu0 0.0
    %169 = vmatpush2.msra.mxu0 0.0
    %170 = vmatprep.subr.mxu0 0.0
    %171 = vmatpush2.msra.mxu0 0.0
    %172 = vmatprep.subr.mxu0 0.0
    %173 = vmatpush2.msra.mxu0 0.0
    %174 = vmatprep.subr.mxu0 0.0
    %175 = vmatpush2.msra.mxu0 0.0
    %176 = vmatprep.subr.mxu0 0.0
    %177 = vmatpush2.msra.mxu0 0.0
    %178 = vmatprep.subr.mxu0 0.0
    %179 = vmatpush2.msra.mxu0 0.0
    %180 = vmatprep.subr.mxu0 0.0
    %181 = vmatpush2.msra.mxu0 0.0
    %182 = vmatprep.subr.mxu0 0.0
    %183 = vmatpush2.msra.mxu0 0.0
    %184 = vmatprep.subr.mxu0 0.0
    %185 = vmatpush2.msra.mxu0 0.0
    %186 = vmatprep.subr.mxu0 0.0
    %187 = vmatpush2.msra.mxu0 0.0
    %188 = vmatprep.subr.mxu0 0.0
    %189 = vmatpush2.msra.mxu0 0.0
    %190 = vmatprep.subr.mxu0 0.0
    %191 = vmatpush2.msra.mxu0 0.0
    %192 = vmatprep.subr.mxu0 0.0
    %193 = vmatpush2.msra.mxu0 0.0
    %194 = vmatprep.mubr.f32.mxu0 0.0
    %195 = vmatmul.mubr.f32.gmra.mxu0 %v125
    %v196 = vpop.f32.mrf.mxu0
    %v197 = vadd.f32 %v121, %v196
    %v198 = vpop.f32.mrf.mxu0
    %199 = vmatprep.mubr.f32.mxu0 0.0
    %200 = vmatmul.mubr.f32.gmra.mxu0 %v128
    %v201 = vpop.f32.mrf.mxu0
    %v202 = vadd.f32 %v121, %v201
    %v203 = vpop.f32.mrf.mxu0
    %204 = vdwg.mxu0
    %v205 = vld [vmem:[#allocation8] sm:$0xff]
    %v206 = vld [vmem:[#allocation8 + $0x8] sm:$0xff]
    %v207 = vld [vmem:[#allocation8 + $0x10] sm:$0xff]
    %v208 = vld [vmem:[#allocation8 + $0x18] sm:$0xff]
    %v209 = vld [vmem:[#allocation8 + $0x20] sm:$0xff]
    %v210 = vld [vmem:[#allocation8 + $0x28] sm:$0xff]
    %v211 = vld [vmem:[#allocation8 + $0x30] sm:$0xff]
    %v212 = vld [vmem:[#allocation8 + $0x38] sm:$0xff]
    %v213 = vld [vmem:[#allocation8 + $0x40] sm:$0xff]
    %v214 = vld [vmem:[#allocation8 + $0x48] sm:$0xff]
    %v215 = vld [vmem:[#allocation8 + $0x50] sm:$0xff]
    %v216 = vld [vmem:[#allocation8 + $0x58] sm:$0xff]
    %v217 = vld [vmem:[#allocation8 + $0x60] sm:$0xff]
    %v218 = vld [vmem:[#allocation8 + $0x68] sm:$0xff]
    %v219 = vld [vmem:[#allocation8 + $0x70] sm:$0xff]
    %v220 = vld [vmem:[#allocation8 + $0x78] sm:$0xff]
    %v221 = vld [vmem:[#allocation8 + $0x80] sm:$0xff]
    %v222 = vld [vmem:[#allocation8 + $0x88] sm:$0xff]
    %v223 = vld [vmem:[#allocation8 + $0x90] sm:$0xff]
    %v224 = vld [vmem:[#allocation8 + $0x98] sm:$0xff]
    %v225 = vld [vmem:[#allocation8 + $0xa0] sm:$0xff]
    %v226 = vld [vmem:[#allocation8 + $0xa8] sm:$0xff]
    %v227 = vld [vmem:[#allocation8 + $0xb0] sm:$0xff]
    %v228 = vld [vmem:[#allocation8 + $0xb8] sm:$0xff]
    %v229 = vld [vmem:[%s5] sm:$0x3]
    %v231 = vlaneseq
    %v232 = vshrl.u32 %v231, 7
    %v233 = vsub.s32 0, %v232
    %v234 = vrot.slane %v229, %v233
    %v235 = vlaneseq
    %v236 = vshrl.u32 %v235, 7
    %v237 = vsub.s32 1, %v236
    %v238 = vrot.slane %v229, %v237
    %v242 = vsel %vm123, %v100, 0
    %v245 = vsel %vm123, %v101, 0
    %v248 = vsel %vm123, %v102, 0
    %v251 = vsel %vm123, %v103, 0
    %253 = vmatprep.subr.mxu0 0.0
    %254 = vmatpush1.msra.mxu0 0.0
    %255 = vmatprep.subr.mxu0 0.0
    %256 = vmatpush1.msra.mxu0 0.0
    %257 = vmatprep.subr.mxu0 0.0
    %258 = vmatpush1.msra.mxu0 0.0
    %259 = vmatprep.subr.mxu0 0.0
    %260 = vmatpush1.msra.mxu0 0.0
    %261 = vmatprep.subr.mxu0 %v228
    %262 = vmatpush1.msra.mxu0 %v227
    %263 = vmatprep.subr.mxu0 %v226
    %264 = vmatpush1.msra.mxu0 %v225
    %265 = vmatprep.subr.mxu0 %v224
    %266 = vmatpush1.msra.mxu0 %v223
    %267 = vmatprep.subr.mxu0 %v222
    %268 = vmatpush1.msra.mxu0 %v221
    %269 = vmatprep.subr.mxu0 %v220
    %270 = vmatpush1.msra.mxu0 %v219
    %271 = vmatprep.subr.mxu0 %v218
    %272 = vmatpush1.msra.mxu0 %v217
    %273 = vmatprep.subr.mxu0 %v216
    %274 = vmatpush1.msra.mxu0 %v215
    %275 = vmatprep.subr.mxu0 %v214
    %276 = vmatpush1.msra.mxu0 %v213
    %277 = vmatprep.subr.mxu0 %v212
    %278 = vmatpush1.msra.mxu0 %v211
    %279 = vmatprep.subr.mxu0 %v210
    %280 = vmatpush1.msra.mxu0 %v209
    %281 = vmatprep.subr.mxu0 %v208
    %282 = vmatpush1.msra.mxu0 %v207
    %283 = vmatprep.subr.mxu0 %v206
    %284 = vmatpush1.msra.mxu0 %v205
    %285 = vmatprep.subr.mxu0 0.0
    %286 = vmatpush2.msra.mxu0 0.0
    %287 = vmatprep.subr.mxu0 0.0
    %288 = vmatpush2.msra.mxu0 0.0
    %289 = vmatprep.subr.mxu0 0.0
    %290 = vmatpush2.msra.mxu0 0.0
    %291 = vmatprep.subr.mxu0 0.0
    %292 = vmatpush2.msra.mxu0 0.0
    %293 = vmatprep.subr.mxu0 0.0
    %294 = vmatpush2.msra.mxu0 0.0
    %295 = vmatprep.subr.mxu0 0.0
    %296 = vmatpush2.msra.mxu0 0.0
    %297 = vmatprep.subr.mxu0 0.0
    %298 = vmatpush2.msra.mxu0 0.0
    %299 = vmatprep.subr.mxu0 0.0
    %300 = vmatpush2.msra.mxu0 0.0
    %301 = vmatprep.subr.mxu0 0.0
    %302 = vmatpush2.msra.mxu0 0.0
    %303 = vmatprep.subr.mxu0 0.0
    %304 = vmatpush2.msra.mxu0 0.0
    %305 = vmatprep.subr.mxu0 0.0
    %306 = vmatpush2.msra.mxu0 0.0
    %307 = vmatprep.subr.mxu0 0.0
    %308 = vmatpush2.msra.mxu0 0.0
    %309 = vmatprep.subr.mxu0 0.0
    %310 = vmatpush2.msra.mxu0 0.0
    %311 = vmatprep.subr.mxu0 0.0
    %312 = vmatpush2.msra.mxu0 0.0
    %313 = vmatprep.subr.mxu0 0.0
    %314 = vmatpush2.msra.mxu0 0.0
    %315 = vmatprep.subr.mxu0 0.0
    %316 = vmatpush2.msra.mxu0 0.0
    %317 = vmatprep.mubr.f32.mxu0 0.0
    %318 = vmatmul.mubr.f32.gmra.mxu0 %v242
    %v319 = vpop.f32.mrf.mxu0
    %v320 = vadd.f32 %v234, %v319
    %v321 = vpop.f32.mrf.mxu0
    %v322 = vadd.f32 %v238, %v321
    %323 = vmatprep.mubr.f32.mxu0 0.0
    %324 = vmatmul.mubr.f32.gmra.mxu0 %v245
    %v325 = vpop.f32.mrf.mxu0
    %v326 = vadd.f32 %v234, %v325
    %v327 = vpop.f32.mrf.mxu0
    %v328 = vadd.f32 %v238, %v327
    %329 = vmatprep.mubr.f32.mxu0 0.0
    %330 = vmatmul.mubr.f32.gmra.mxu0 %v248
    %v331 = vpop.f32.mrf.mxu0
    %v332 = vadd.f32 %v234, %v331
    %v333 = vpop.f32.mrf.mxu0
    %v334 = vadd.f32 %v238, %v333
    %335 = vmatprep.mubr.f32.mxu0 0.0
    %336 = vmatmul.mubr.f32.gmra.mxu0 %v251
    %v337 = vpop.f32.mrf.mxu0
    %v338 = vadd.f32 %v234, %v337
    %v339 = vpop.f32.mrf.mxu0
    %v340 = vadd.f32 %v238, %v339
    %341 = vdwg.mxu0
    %344 = vrot.lane.b32.xlu0 %v197, 112
    %v345 = vpop.permute.xlu0 %344
    %346 = vrot.lane.b32.xlu0 %v202, 112
    %v347 = vpop.permute.xlu0 %346
    %348 = vrot.lane.b32.xlu0 %v197, 96
    %v349 = vpop.permute.xlu0 %348
    %350 = vrot.lane.b32.xlu0 %v202, 96
    %v351 = vpop.permute.xlu0 %350
    %352 = vrot.lane.b32.xlu0 %v197, 80
    %v353 = vpop.permute.xlu0 %352
    %354 = vrot.lane.b32.xlu0 %v202, 80
    %v355 = vpop.permute.xlu0 %354
    %356 = vrot.lane.b32.xlu0 %v197, 64
    %v357 = vpop.permute.xlu0 %356
    %358 = vrot.lane.b32.xlu0 %v202, 64
    %v359 = vpop.permute.xlu0 %358
    %360 = vrot.lane.b32.xlu0 %v197, 48
    %v361 = vpop.permute.xlu0 %360
    %362 = vrot.lane.b32.xlu0 %v202, 48
    %v363 = vpop.permute.xlu0 %362
    %368 = vrot.lane.b32.xlu0 %v320, 112
    %v369 = vpop.permute.xlu0 %368
    %370 = vrot.lane.b32.xlu0 %v326, 112
    %v371 = vpop.permute.xlu0 %370
    %372 = vrot.lane.b32.xlu0 %v332, 112
    %v373 = vpop.permute.xlu0 %372
    %374 = vrot.lane.b32.xlu0 %v338, 112
    %v375 = vpop.permute.xlu0 %374
    %376 = vrot.lane.b32.xlu0 %v320, 96
    %v377 = vpop.permute.xlu0 %376
    %378 = vrot.lane.b32.xlu0 %v326, 96
    %v379 = vpop.permute.xlu0 %378
    %380 = vrot.lane.b32.xlu0 %v332, 96
    %v381 = vpop.permute.xlu0 %380
    %382 = vrot.lane.b32.xlu0 %v338, 96
    %v383 = vpop.permute.xlu0 %382
    %384 = vrot.lane.b32.xlu0 %v320, 80
    %v385 = vpop.permute.xlu0 %384
    %386 = vrot.lane.b32.xlu0 %v326, 80
    %v387 = vpop.permute.xlu0 %386
    %388 = vrot.lane.b32.xlu0 %v332, 80
    %v389 = vpop.permute.xlu0 %388
    %390 = vrot.lane.b32.xlu0 %v338, 80
    %v391 = vpop.permute.xlu0 %390
    %392 = vrot.lane.b32.xlu0 %v320, 64
    %v393 = vpop.permute.xlu0 %392
    %394 = vrot.lane.b32.xlu0 %v326, 64
    %v395 = vpop.permute.xlu0 %394
    %396 = vrot.lane.b32.xlu0 %v332, 64
    %v397 = vpop.permute.xlu0 %396
    %398 = vrot.lane.b32.xlu0 %v338, 64
    %v399 = vpop.permute.xlu0 %398
    %400 = vrot.lane.b32.xlu0 %v320, 48
    %v401 = vpop.permute.xlu0 %400
    %402 = vrot.lane.b32.xlu0 %v326, 48
    %v403 = vpop.permute.xlu0 %402
    %404 = vrot.lane.b32.xlu0 %v332, 48
    %v405 = vpop.permute.xlu0 %404
    %406 = vrot.lane.b32.xlu0 %v338, 48
    %v407 = vpop.permute.xlu0 %406
    %412 = vrot.lane.b32.xlu0 %v322, 96
    %v413 = vpop.permute.xlu0 %412
    %414 = vrot.lane.b32.xlu0 %v328, 96
    %v415 = vpop.permute.xlu0 %414
    %416 = vrot.lane.b32.xlu0 %v334, 96
    %v417 = vpop.permute.xlu0 %416
    %418 = vrot.lane.b32.xlu0 %v340, 96
    %v419 = vpop.permute.xlu0 %418
    %420 = vrot.lane.b32.xlu0 %v322, 80
    %v421 = vpop.permute.xlu0 %420
    %422 = vrot.lane.b32.xlu0 %v328, 80
    %v423 = vpop.permute.xlu0 %422
    %424 = vrot.lane.b32.xlu0 %v334, 80
    %v425 = vpop.permute.xlu0 %424
    %426 = vrot.lane.b32.xlu0 %v340, 80
    %v427 = vpop.permute.xlu0 %426
    %428 = vrot.lane.b32.xlu0 %v322, 64
    %v429 = vpop.permute.xlu0 %428
    %430 = vrot.lane.b32.xlu0 %v328, 64
    %v431 = vpop.permute.xlu0 %430
    %432 = vrot.lane.b32.xlu0 %v334, 64
    %v433 = vpop.permute.xlu0 %432
    %434 = vrot.lane.b32.xlu0 %v340, 64
    %v435 = vpop.permute.xlu0 %434
    %436 = vrot.lane.b32.xlu0 %v322, 48
    %v437 = vpop.permute.xlu0 %436
    %438 = vrot.lane.b32.xlu0 %v328, 48
    %v439 = vpop.permute.xlu0 %438
    %440 = vrot.lane.b32.xlu0 %v334, 48
    %v441 = vpop.permute.xlu0 %440
    %442 = vrot.lane.b32.xlu0 %v340, 48
    %v443 = vpop.permute.xlu0 %442
    %vm444 = vcmask 130048
    %v445 = vsel %vm444, %v197, 0
    %v447 = vsel %vm444, %v320, 0
    %v449 = vsel %vm444, %v326, 0
    %451 = vmatprep.subr.mxu0 0.0
    %452 = vmatpush1.xpose.msra.mxu0 0.0
    %453 = vmatprep.subr.mxu0 0.0
    %454 = vmatpush1.xpose.msra.mxu0 0.0
    %455 = vmatprep.subr.mxu0 0.0
    %456 = vmatpush1.xpose.msra.mxu0 0.0
    %457 = vmatprep.subr.mxu0 0.0
    %458 = vmatpush1.xpose.msra.mxu0 0.0
    %459 = vmatprep.subr.mxu0 0.0
    %460 = vmatpush1.xpose.msra.mxu0 0.0
    %461 = vmatprep.subr.mxu0 0.0
    %462 = vmatpush1.xpose.msra.mxu0 0.0
    %463 = vmatprep.subr.mxu0 0.0
    %464 = vmatpush1.xpose.msra.mxu0 0.0
    %465 = vmatprep.subr.mxu0 0.0
    %466 = vmatpush1.xpose.msra.mxu0 0.0
    %467 = vmatprep.subr.mxu0 0.0
    %468 = vmatpush1.xpose.msra.mxu0 0.0
    %469 = vmatprep.subr.mxu0 0.0
    %470 = vmatpush1.xpose.msra.mxu0 0.0
    %471 = vmatprep.subr.mxu0 0.0
    %472 = vmatpush1.xpose.msra.mxu0 0.0
    %473 = vmatprep.subr.mxu0 0.0
    %474 = vmatpush1.xpose.msra.mxu0 0.0
    %475 = vmatprep.subr.mxu0 0.0
    %476 = vmatpush1.xpose.msra.mxu0 0.0
    %477 = vmatprep.subr.mxu0 0.0
    %478 = vmatpush1.xpose.msra.mxu0 0.0
    %479 = vmatprep.subr.mxu0 0.0
    %480 = vmatpush1.xpose.msra.mxu0 %v449
    %481 = vmatprep.subr.mxu0 0.0
    %482 = vmatpush1.xpose.msra.mxu0 %v447
    %483 = vmatprep.subr.mxu0 0.0
    %484 = vmatpush2.xpose.msra.mxu0 0.0
    %485 = vmatprep.subr.mxu0 0.0
    %486 = vmatpush2.xpose.msra.mxu0 0.0
    %487 = vmatprep.subr.mxu0 0.0
    %488 = vmatpush2.xpose.msra.mxu0 0.0
    %489 = vmatprep.subr.mxu0 0.0
    %490 = vmatpush2.xpose.msra.mxu0 0.0
    %491 = vmatprep.subr.mxu0 0.0
    %492 = vmatpush2.xpose.msra.mxu0 0.0
    %493 = vmatprep.subr.mxu0 0.0
    %494 = vmatpush2.xpose.msra.mxu0 0.0
    %495 = vmatprep.subr.mxu0 0.0
    %496 = vmatpush2.xpose.msra.mxu0 0.0
    %497 = vmatprep.subr.mxu0 0.0
    %498 = vmatpush2.xpose.msra.mxu0 0.0
    %499 = vmatprep.subr.mxu0 0.0
    %500 = vmatpush2.xpose.msra.mxu0 0.0
    %501 = vmatprep.subr.mxu0 0.0
    %502 = vmatpush2.xpose.msra.mxu0 0.0
    %503 = vmatprep.subr.mxu0 0.0
    %504 = vmatpush2.xpose.msra.mxu0 0.0
    %505 = vmatprep.subr.mxu0 0.0
    %506 = vmatpush2.xpose.msra.mxu0 0.0
    %507 = vmatprep.subr.mxu0 0.0
    %508 = vmatpush2.xpose.msra.mxu0 0.0
    %509 = vmatprep.subr.mxu0 0.0
    %510 = vmatpush2.xpose.msra.mxu0 0.0
    %511 = vmatprep.subr.mxu0 0.0
    %512 = vmatpush2.xpose.msra.mxu0 0.0
    %513 = vmatprep.subr.mxu0 0.0
    %514 = vmatpush2.xpose.msra.mxu0 0.0
    %515 = vmatprep.mubr.f32.mxu0 0.0
    %516 = vmatmul.mubr.f32.gmra.mxu0 %v445
    %v517 = vpop.f32.mrf.mxu0
    %v518 = vadd.f32 0.0, %v517
    %v519 = vpop.f32.mrf.mxu0
    %520 = vdwg.mxu0
    %v521 = vsel %vm444, %v202, 0
    %v523 = vsel %vm444, %v332, 0
    %v525 = vsel %vm444, %v338, 0
    %527 = vmatprep.subr.mxu0 0.0
    %528 = vmatpush1.xpose.msra.mxu0 0.0
    %529 = vmatprep.subr.mxu0 0.0
    %530 = vmatpush1.xpose.msra.mxu0 0.0
    %531 = vmatprep.subr.mxu0 0.0
    %532 = vmatpush1.xpose.msra.mxu0 0.0
    %533 = vmatprep.subr.mxu0 0.0
    %534 = vmatpush1.xpose.msra.mxu0 0.0
    %535 = vmatprep.subr.mxu0 0.0
    %536 = vmatpush1.xpose.msra.mxu0 0.0
    %537 = vmatprep.subr.mxu0 0.0
    %538 = vmatpush1.xpose.msra.mxu0 0.0
    %539 = vmatprep.subr.mxu0 0.0
    %540 = vmatpush1.xpose.msra.mxu0 0.0
    %541 = vmatprep.subr.mxu0 0.0
    %542 = vmatpush1.xpose.msra.mxu0 0.0
    %543 = vmatprep.subr.mxu0 0.0
    %544 = vmatpush1.xpose.msra.mxu0 0.0
    %545 = vmatprep.subr.mxu0 0.0
    %546 = vmatpush1.xpose.msra.mxu0 0.0
    %547 = vmatprep.subr.mxu0 0.0
    %548 = vmatpush1.xpose.msra.mxu0 0.0
    %549 = vmatprep.subr.mxu0 0.0
    %550 = vmatpush1.xpose.msra.mxu0 0.0
    %551 = vmatprep.subr.mxu0 0.0
    %552 = vmatpush1.xpose.msra.mxu0 0.0
    %553 = vmatprep.subr.mxu0 0.0
    %554 = vmatpush1.xpose.msra.mxu0 0.0
    %555 = vmatprep.subr.mxu0 0.0
    %556 = vmatpush1.xpose.msra.mxu0 %v525
    %557 = vmatprep.subr.mxu0 0.0
    %558 = vmatpush1.xpose.msra.mxu0 %v523
    %559 = vmatprep.subr.mxu0 0.0
    %560 = vmatpush2.xpose.msra.mxu0 0.0
    %561 = vmatprep.subr.mxu0 0.0
    %562 = vmatpush2.xpose.msra.mxu0 0.0
    %563 = vmatprep.subr.mxu0 0.0
    %564 = vmatpush2.xpose.msra.mxu0 0.0
    %565 = vmatprep.subr.mxu0 0.0
    %566 = vmatpush2.xpose.msra.mxu0 0.0
    %567 = vmatprep.subr.mxu0 0.0
    %568 = vmatpush2.xpose.msra.mxu0 0.0
    %569 = vmatprep.subr.mxu0 0.0
    %570 = vmatpush2.xpose.msra.mxu0 0.0
    %571 = vmatprep.subr.mxu0 0.0
    %572 = vmatpush2.xpose.msra.mxu0 0.0
    %573 = vmatprep.subr.mxu0 0.0
    %574 = vmatpush2.xpose.msra.mxu0 0.0
    %575 = vmatprep.subr.mxu0 0.0
    %576 = vmatpush2.xpose.msra.mxu0 0.0
    %577 = vmatprep.subr.mxu0 0.0
    %578 = vmatpush2.xpose.msra.mxu0 0.0
    %579 = vmatprep.subr.mxu0 0.0
    %580 = vmatpush2.xpose.msra.mxu0 0.0
    %581 = vmatprep.subr.mxu0 0.0
    %582 = vmatpush2.xpose.msra.mxu0 0.0
    %583 = vmatprep.subr.mxu0 0.0
    %584 = vmatpush2.xpose.msra.mxu0 0.0
    %585 = vmatprep.subr.mxu0 0.0
    %586 = vmatpush2.xpose.msra.mxu0 0.0
    %587 = vmatprep.subr.mxu0 0.0
    %588 = vmatpush2.xpose.msra.mxu0 0.0
    %589 = vmatprep.subr.mxu0 0.0
    %590 = vmatpush2.xpose.msra.mxu0 0.0
    %591 = vmatprep.mubr.f32.mxu0 0.0
    %592 = vmatmul.mubr.f32.gmra.mxu0 %v521
    %v593 = vpop.f32.mrf.mxu0
    %v594 = vadd.f32 0.0, %v593
    %v595 = vpop.f32.mrf.mxu0
    %596 = vdwg.mxu0
    %v597 = vsel %vm444, %v345, 0
    %v599 = vsel %vm444, %v369, 0
    %v601 = vsel %vm444, %v371, 0
    %603 = vmatprep.subr.mxu0 0.0
    %604 = vmatpush1.xpose.msra.mxu0 0.0
    %605 = vmatprep.subr.mxu0 0.0
    %606 = vmatpush1.xpose.msra.mxu0 0.0
    %607 = vmatprep.subr.mxu0 0.0
    %608 = vmatpush1.xpose.msra.mxu0 0.0
    %609 = vmatprep.subr.mxu0 0.0
    %610 = vmatpush1.xpose.msra.mxu0 0.0
    %611 = vmatprep.subr.mxu0 0.0
    %612 = vmatpush1.xpose.msra.mxu0 0.0
    %613 = vmatprep.subr.mxu0 0.0
    %614 = vmatpush1.xpose.msra.mxu0 0.0
    %615 = vmatprep.subr.mxu0 0.0
    %616 = vmatpush1.xpose.msra.mxu0 0.0
    %617 = vmatprep.subr.mxu0 0.0
    %618 = vmatpush1.xpose.msra.mxu0 0.0
    %619 = vmatprep.subr.mxu0 0.0
    %620 = vmatpush1.xpose.msra.mxu0 0.0
    %621 = vmatprep.subr.mxu0 0.0
    %622 = vmatpush1.xpose.msra.mxu0 0.0
    %623 = vmatprep.subr.mxu0 0.0
    %624 = vmatpush1.xpose.msra.mxu0 0.0
    %625 = vmatprep.subr.mxu0 0.0
    %626 = vmatpush1.xpose.msra.mxu0 0.0
    %627 = vmatprep.subr.mxu0 0.0
    %628 = vmatpush1.xpose.msra.mxu0 0.0
    %629 = vmatprep.subr.mxu0 0.0
    %630 = vmatpush1.xpose.msra.mxu0 0.0
    %631 = vmatprep.subr.mxu0 0.0
    %632 = vmatpush1.xpose.msra.mxu0 %v601
    %633 = vmatprep.subr.mxu0 0.0
    %634 = vmatpush1.xpose.msra.mxu0 %v599
    %635 = vmatprep.subr.mxu0 0.0
    %636 = vmatpush2.xpose.msra.mxu0 0.0
    %637 = vmatprep.subr.mxu0 0.0
    %638 = vmatpush2.xpose.msra.mxu0 0.0
    %639 = vmatprep.subr.mxu0 0.0
    %640 = vmatpush2.xpose.msra.mxu0 0.0
    %641 = vmatprep.subr.mxu0 0.0
    %642 = vmatpush2.xpose.msra.mxu0 0.0
    %643 = vmatprep.subr.mxu0 0.0
    %644 = vmatpush2.xpose.msra.mxu0 0.0
    %645 = vmatprep.subr.mxu0 0.0
    %646 = vmatpush2.xpose.msra.mxu0 0.0
    %647 = vmatprep.subr.mxu0 0.0
    %648 = vmatpush2.xpose.msra.mxu0 0.0
    %649 = vmatprep.subr.mxu0 0.0
    %650 = vmatpush2.xpose.msra.mxu0 0.0
    %651 = vmatprep.subr.mxu0 0.0
    %652 = vmatpush2.xpose.msra.mxu0 0.0
    %653 = vmatprep.subr.mxu0 0.0
    %654 = vmatpush2.xpose.msra.mxu0 0.0
    %655 = vmatprep.subr.mxu0 0.0
    %656 = vmatpush2.xpose.msra.mxu0 0.0
    %657 = vmatprep.subr.mxu0 0.0
    %658 = vmatpush2.xpose.msra.mxu0 0.0
    %659 = vmatprep.subr.mxu0 0.0
    %660 = vmatpush2.xpose.msra.mxu0 0.0
    %661 = vmatprep.subr.mxu0 0.0
    %662 = vmatpush2.xpose.msra.mxu0 0.0
    %663 = vmatprep.subr.mxu0 0.0
    %664 = vmatpush2.xpose.msra.mxu0 0.0
    %665 = vmatprep.subr.mxu0 0.0
    %666 = vmatpush2.xpose.msra.mxu0 0.0
    %667 = vmatprep.mubr.f32.mxu0 0.0
    %668 = vmatmul.mubr.f32.gmra.mxu0 %v597
    %v669 = vpop.f32.mrf.mxu0
    %v670 = vadd.f32 0.0, %v669
    %v671 = vpop.f32.mrf.mxu0
    %672 = vdwg.mxu0
    %v673 = vsel %vm444, %v347, 0
    %v675 = vsel %vm444, %v373, 0
    %v677 = vsel %vm444, %v375, 0
    %679 = vmatprep.subr.mxu0 0.0
    %680 = vmatpush1.xpose.msra.mxu0 0.0
    %681 = vmatprep.subr.mxu0 0.0
    %682 = vmatpush1.xpose.msra.mxu0 0.0
    %683 = vmatprep.subr.mxu0 0.0
    %684 = vmatpush1.xpose.msra.mxu0 0.0
    %685 = vmatprep.subr.mxu0 0.0
    %686 = vmatpush1.xpose.msra.mxu0 0.0
    %687 = vmatprep.subr.mxu0 0.0
    %688 = vmatpush1.xpose.msra.mxu0 0.0
    %689 = vmatprep.subr.mxu0 0.0
    %690 = vmatpush1.xpose.msra.mxu0 0.0
    %691 = vmatprep.subr.mxu0 0.0
    %692 = vmatpush1.xpose.msra.mxu0 0.0
    %693 = vmatprep.subr.mxu0 0.0
    %694 = vmatpush1.xpose.msra.mxu0 0.0
    %695 = vmatprep.subr.mxu0 0.0
    %696 = vmatpush1.xpose.msra.mxu0 0.0
    %697 = vmatprep.subr.mxu0 0.0
    %698 = vmatpush1.xpose.msra.mxu0 0.0
    %699 = vmatprep.subr.mxu0 0.0
    %700 = vmatpush1.xpose.msra.mxu0 0.0
    %701 = vmatprep.subr.mxu0 0.0
    %702 = vmatpush1.xpose.msra.mxu0 0.0
    %703 = vmatprep.subr.mxu0 0.0
    %704 = vmatpush1.xpose.msra.mxu0 0.0
    %705 = vmatprep.subr.mxu0 0.0
    %706 = vmatpush1.xpose.msra.mxu0 0.0
    %707 = vmatprep.subr.mxu0 0.0
    %708 = vmatpush1.xpose.msra.mxu0 %v677
    %709 = vmatprep.subr.mxu0 0.0
    %710 = vmatpush1.xpose.msra.mxu0 %v675
    %711 = vmatprep.subr.mxu0 0.0
    %712 = vmatpush2.xpose.msra.mxu0 0.0
    %713 = vmatprep.subr.mxu0 0.0
    %714 = vmatpush2.xpose.msra.mxu0 0.0
    %715 = vmatprep.subr.mxu0 0.0
    %716 = vmatpush2.xpose.msra.mxu0 0.0
    %717 = vmatprep.subr.mxu0 0.0
    %718 = vmatpush2.xpose.msra.mxu0 0.0
    %719 = vmatprep.subr.mxu0 0.0
    %720 = vmatpush2.xpose.msra.mxu0 0.0
    %721 = vmatprep.subr.mxu0 0.0
    %722 = vmatpush2.xpose.msra.mxu0 0.0
    %723 = vmatprep.subr.mxu0 0.0
    %724 = vmatpush2.xpose.msra.mxu0 0.0
    %725 = vmatprep.subr.mxu0 0.0
    %726 = vmatpush2.xpose.msra.mxu0 0.0
    %727 = vmatprep.subr.mxu0 0.0
    %728 = vmatpush2.xpose.msra.mxu0 0.0
    %729 = vmatprep.subr.mxu0 0.0
    %730 = vmatpush2.xpose.msra.mxu0 0.0
    %731 = vmatprep.subr.mxu0 0.0
    %732 = vmatpush2.xpose.msra.mxu0 0.0
    %733 = vmatprep.subr.mxu0 0.0
    %734 = vmatpush2.xpose.msra.mxu0 0.0
    %735 = vmatprep.subr.mxu0 0.0
    %736 = vmatpush2.xpose.msra.mxu0 0.0
    %737 = vmatprep.subr.mxu0 0.0
    %738 = vmatpush2.xpose.msra.mxu0 0.0
    %739 = vmatprep.subr.mxu0 0.0
    %740 = vmatpush2.xpose.msra.mxu0 0.0
    %741 = vmatprep.subr.mxu0 0.0
    %742 = vmatpush2.xpose.msra.mxu0 0.0
    %743 = vmatprep.mubr.f32.mxu0 0.0
    %744 = vmatmul.mubr.f32.gmra.mxu0 %v673
    %v745 = vpop.f32.mrf.mxu0
    %v746 = vadd.f32 0.0, %v745
    %v747 = vpop.f32.mrf.mxu0
    %748 = vdwg.mxu0
    %v749 = vsel %vm444, %v349, 0
    %v751 = vsel %vm444, %v377, 0
    %v753 = vsel %vm444, %v379, 0
    %755 = vmatprep.subr.mxu0 0.0
    %756 = vmatpush1.xpose.msra.mxu0 0.0
    %757 = vmatprep.subr.mxu0 0.0
    %758 = vmatpush1.xpose.msra.mxu0 0.0
    %759 = vmatprep.subr.mxu0 0.0
    %760 = vmatpush1.xpose.msra.mxu0 0.0
    %761 = vmatprep.subr.mxu0 0.0
    %762 = vmatpush1.xpose.msra.mxu0 0.0
    %763 = vmatprep.subr.mxu0 0.0
    %764 = vmatpush1.xpose.msra.mxu0 0.0
    %765 = vmatprep.subr.mxu0 0.0
    %766 = vmatpush1.xpose.msra.mxu0 0.0
    %767 = vmatprep.subr.mxu0 0.0
    %768 = vmatpush1.xpose.msra.mxu0 0.0
    %769 = vmatprep.subr.mxu0 0.0
    %770 = vmatpush1.xpose.msra.mxu0 0.0
    %771 = vmatprep.subr.mxu0 0.0
    %772 = vmatpush1.xpose.msra.mxu0 0.0
    %773 = vmatprep.subr.mxu0 0.0
    %774 = vmatpush1.xpose.msra.mxu0 0.0
    %775 = vmatprep.subr.mxu0 0.0
    %776 = vmatpush1.xpose.msra.mxu0 0.0
    %777 = vmatprep.subr.mxu0 0.0
    %778 = vmatpush1.xpose.msra.mxu0 0.0
    %779 = vmatprep.subr.mxu0 0.0
    %780 = vmatpush1.xpose.msra.mxu0 0.0
    %781 = vmatprep.subr.mxu0 0.0
    %782 = vmatpush1.xpose.msra.mxu0 0.0
    %783 = vmatprep.subr.mxu0 0.0
    %784 = vmatpush1.xpose.msra.mxu0 %v753
    %785 = vmatprep.subr.mxu0 0.0
    %786 = vmatpush1.xpose.msra.mxu0 %v751
    %787 = vmatprep.subr.mxu0 0.0
    %788 = vmatpush2.xpose.msra.mxu0 0.0
    %789 = vmatprep.subr.mxu0 0.0
    %790 = vmatpush2.xpose.msra.mxu0 0.0
    %791 = vmatprep.subr.mxu0 0.0
    %792 = vmatpush2.xpose.msra.mxu0 0.0
    %793 = vmatprep.subr.mxu0 0.0
    %794 = vmatpush2.xpose.msra.mxu0 0.0
    %795 = vmatprep.subr.mxu0 0.0
    %796 = vmatpush2.xpose.msra.mxu0 0.0
    %797 = vmatprep.subr.mxu0 0.0
    %798 = vmatpush2.xpose.msra.mxu0 0.0
    %799 = vmatprep.subr.mxu0 0.0
    %800 = vmatpush2.xpose.msra.mxu0 0.0
    %801 = vmatprep.subr.mxu0 0.0
    %802 = vmatpush2.xpose.msra.mxu0 0.0
    %803 = vmatprep.subr.mxu0 0.0
    %804 = vmatpush2.xpose.msra.mxu0 0.0
    %805 = vmatprep.subr.mxu0 0.0
    %806 = vmatpush2.xpose.msra.mxu0 0.0
    %807 = vmatprep.subr.mxu0 0.0
    %808 = vmatpush2.xpose.msra.mxu0 0.0
    %809 = vmatprep.subr.mxu0 0.0
    %810 = vmatpush2.xpose.msra.mxu0 0.0
    %811 = vmatprep.subr.mxu0 0.0
    %812 = vmatpush2.xpose.msra.mxu0 0.0
    %813 = vmatprep.subr.mxu0 0.0
    %814 = vmatpush2.xpose.msra.mxu0 0.0
    %815 = vmatprep.subr.mxu0 0.0
    %816 = vmatpush2.xpose.msra.mxu0 0.0
    %817 = vmatprep.subr.mxu0 0.0
    %818 = vmatpush2.xpose.msra.mxu0 0.0
    %819 = vmatprep.mubr.f32.mxu0 0.0
    %820 = vmatmul.mubr.f32.gmra.mxu0 %v749
    %v821 = vpop.f32.mrf.mxu0
    %v822 = vadd.f32 0.0, %v821
    %v823 = vpop.f32.mrf.mxu0
    %824 = vdwg.mxu0
    %v825 = vsel %vm444, %v351, 0
    %v827 = vsel %vm444, %v381, 0
    %v829 = vsel %vm444, %v383, 0
    %831 = vmatprep.subr.mxu0 0.0
    %832 = vmatpush1.xpose.msra.mxu0 0.0
    %833 = vmatprep.subr.mxu0 0.0
    %834 = vmatpush1.xpose.msra.mxu0 0.0
    %835 = vmatprep.subr.mxu0 0.0
    %836 = vmatpush1.xpose.msra.mxu0 0.0
    %837 = vmatprep.subr.mxu0 0.0
    %838 = vmatpush1.xpose.msra.mxu0 0.0
    %839 = vmatprep.subr.mxu0 0.0
    %840 = vmatpush1.xpose.msra.mxu0 0.0
    %841 = vmatprep.subr.mxu0 0.0
    %842 = vmatpush1.xpose.msra.mxu0 0.0
    %843 = vmatprep.subr.mxu0 0.0
    %844 = vmatpush1.xpose.msra.mxu0 0.0
    %845 = vmatprep.subr.mxu0 0.0
    %846 = vmatpush1.xpose.msra.mxu0 0.0
    %847 = vmatprep.subr.mxu0 0.0
    %848 = vmatpush1.xpose.msra.mxu0 0.0
    %849 = vmatprep.subr.mxu0 0.0
    %850 = vmatpush1.xpose.msra.mxu0 0.0
    %851 = vmatprep.subr.mxu0 0.0
    %852 = vmatpush1.xpose.msra.mxu0 0.0
    %853 = vmatprep.subr.mxu0 0.0
    %854 = vmatpush1.xpose.msra.mxu0 0.0
    %855 = vmatprep.subr.mxu0 0.0
    %856 = vmatpush1.xpose.msra.mxu0 0.0
    %857 = vmatprep.subr.mxu0 0.0
    %858 = vmatpush1.xpose.msra.mxu0 0.0
    %859 = vmatprep.subr.mxu0 0.0
    %860 = vmatpush1.xpose.msra.mxu0 %v829
    %861 = vmatprep.subr.mxu0 0.0
    %862 = vmatpush1.xpose.msra.mxu0 %v827
    %863 = vmatprep.subr.mxu0 0.0
    %864 = vmatpush2.xpose.msra.mxu0 0.0
    %865 = vmatprep.subr.mxu0 0.0
    %866 = vmatpush2.xpose.msra.mxu0 0.0
    %867 = vmatprep.subr.mxu0 0.0
    %868 = vmatpush2.xpose.msra.mxu0 0.0
    %869 = vmatprep.subr.mxu0 0.0
    %870 = vmatpush2.xpose.msra.mxu0 0.0
    %871 = vmatprep.subr.mxu0 0.0
    %872 = vmatpush2.xpose.msra.mxu0 0.0
    %873 = vmatprep.subr.mxu0 0.0
    %874 = vmatpush2.xpose.msra.mxu0 0.0
    %875 = vmatprep.subr.mxu0 0.0
    %876 = vmatpush2.xpose.msra.mxu0 0.0
    %877 = vmatprep.subr.mxu0 0.0
    %878 = vmatpush2.xpose.msra.mxu0 0.0
    %879 = vmatprep.subr.mxu0 0.0
    %880 = vmatpush2.xpose.msra.mxu0 0.0
    %881 = vmatprep.subr.mxu0 0.0
    %882 = vmatpush2.xpose.msra.mxu0 0.0
    %883 = vmatprep.subr.mxu0 0.0
    %884 = vmatpush2.xpose.msra.mxu0 0.0
    %885 = vmatprep.subr.mxu0 0.0
    %886 = vmatpush2.xpose.msra.mxu0 0.0
    %887 = vmatprep.subr.mxu0 0.0
    %888 = vmatpush2.xpose.msra.mxu0 0.0
    %889 = vmatprep.subr.mxu0 0.0
    %890 = vmatpush2.xpose.msra.mxu0 0.0
    %891 = vmatprep.subr.mxu0 0.0
    %892 = vmatpush2.xpose.msra.mxu0 0.0
    %893 = vmatprep.subr.mxu0 0.0
    %894 = vmatpush2.xpose.msra.mxu0 0.0
    %895 = vmatprep.mubr.f32.mxu0 0.0
    %896 = vmatmul.mubr.f32.gmra.mxu0 %v825
    %v897 = vpop.f32.mrf.mxu0
    %v898 = vadd.f32 0.0, %v897
    %v899 = vpop.f32.mrf.mxu0
    %900 = vdwg.mxu0
    %v901 = vsel %vm444, %v353, 0
    %v903 = vsel %vm444, %v385, 0
    %v905 = vsel %vm444, %v387, 0
    %907 = vmatprep.subr.mxu0 0.0
    %908 = vmatpush1.xpose.msra.mxu0 0.0
    %909 = vmatprep.subr.mxu0 0.0
    %910 = vmatpush1.xpose.msra.mxu0 0.0
    %911 = vmatprep.subr.mxu0 0.0
    %912 = vmatpush1.xpose.msra.mxu0 0.0
    %913 = vmatprep.subr.mxu0 0.0
    %914 = vmatpush1.xpose.msra.mxu0 0.0
    %915 = vmatprep.subr.mxu0 0.0
    %916 = vmatpush1.xpose.msra.mxu0 0.0
    %917 = vmatprep.subr.mxu0 0.0
    %918 = vmatpush1.xpose.msra.mxu0 0.0
    %919 = vmatprep.subr.mxu0 0.0
    %920 = vmatpush1.xpose.msra.mxu0 0.0
    %921 = vmatprep.subr.mxu0 0.0
    %922 = vmatpush1.xpose.msra.mxu0 0.0
    %923 = vmatprep.subr.mxu0 0.0
    %924 = vmatpush1.xpose.msra.mxu0 0.0
    %925 = vmatprep.subr.mxu0 0.0
    %926 = vmatpush1.xpose.msra.mxu0 0.0
    %927 = vmatprep.subr.mxu0 0.0
    %928 = vmatpush1.xpose.msra.mxu0 0.0
    %929 = vmatprep.subr.mxu0 0.0
    %930 = vmatpush1.xpose.msra.mxu0 0.0
    %931 = vmatprep.subr.mxu0 0.0
    %932 = vmatpush1.xpose.msra.mxu0 0.0
    %933 = vmatprep.subr.mxu0 0.0
    %934 = vmatpush1.xpose.msra.mxu0 0.0
    %935 = vmatprep.subr.mxu0 0.0
    %936 = vmatpush1.xpose.msra.mxu0 %v905
    %937 = vmatprep.subr.mxu0 0.0
    %938 = vmatpush1.xpose.msra.mxu0 %v903
    %939 = vmatprep.subr.mxu0 0.0
    %940 = vmatpush2.xpose.msra.mxu0 0.0
    %941 = vmatprep.subr.mxu0 0.0
    %942 = vmatpush2.xpose.msra.mxu0 0.0
    %943 = vmatprep.subr.mxu0 0.0
    %944 = vmatpush2.xpose.msra.mxu0 0.0
    %945 = vmatprep.subr.mxu0 0.0
    %946 = vmatpush2.xpose.msra.mxu0 0.0
    %947 = vmatprep.subr.mxu0 0.0
    %948 = vmatpush2.xpose.msra.mxu0 0.0
    %949 = vmatprep.subr.mxu0 0.0
    %950 = vmatpush2.xpose.msra.mxu0 0.0
    %951 = vmatprep.subr.mxu0 0.0
    %952 = vmatpush2.xpose.msra.mxu0 0.0
    %953 = vmatprep.subr.mxu0 0.0
    %954 = vmatpush2.xpose.msra.mxu0 0.0
    %955 = vmatprep.subr.mxu0 0.0
    %956 = vmatpush2.xpose.msra.mxu0 0.0
    %957 = vmatprep.subr.mxu0 0.0
    %958 = vmatpush2.xpose.msra.mxu0 0.0
    %959 = vmatprep.subr.mxu0 0.0
    %960 = vmatpush2.xpose.msra.mxu0 0.0
    %961 = vmatprep.subr.mxu0 0.0
    %962 = vmatpush2.xpose.msra.mxu0 0.0
    %963 = vmatprep.subr.mxu0 0.0
    %964 = vmatpush2.xpose.msra.mxu0 0.0
    %965 = vmatprep.subr.mxu0 0.0
    %966 = vmatpush2.xpose.msra.mxu0 0.0
    %967 = vmatprep.subr.mxu0 0.0
    %968 = vmatpush2.xpose.msra.mxu0 0.0
    %969 = vmatprep.subr.mxu0 0.0
    %970 = vmatpush2.xpose.msra.mxu0 0.0
    %971 = vmatprep.mubr.f32.mxu0 0.0
    %972 = vmatmul.mubr.f32.gmra.mxu0 %v901
    %v973 = vpop.f32.mrf.mxu0
    %v974 = vadd.f32 0.0, %v973
    %v975 = vpop.f32.mrf.mxu0
    %976 = vdwg.mxu0
    %v977 = vsel %vm444, %v355, 0
    %v979 = vsel %vm444, %v389, 0
    %v981 = vsel %vm444, %v391, 0
    %983 = vmatprep.subr.mxu0 0.0
    %984 = vmatpush1.xpose.msra.mxu0 0.0
    %985 = vmatprep.subr.mxu0 0.0
    %986 = vmatpush1.xpose.msra.mxu0 0.0
    %987 = vmatprep.subr.mxu0 0.0
    %988 = vmatpush1.xpose.msra.mxu0 0.0
    %989 = vmatprep.subr.mxu0 0.0
    %990 = vmatpush1.xpose.msra.mxu0 0.0
    %991 = vmatprep.subr.mxu0 0.0
    %992 = vmatpush1.xpose.msra.mxu0 0.0
    %993 = vmatprep.subr.mxu0 0.0
    %994 = vmatpush1.xpose.msra.mxu0 0.0
    %995 = vmatprep.subr.mxu0 0.0
    %996 = vmatpush1.xpose.msra.mxu0 0.0
    %997 = vmatprep.subr.mxu0 0.0
    %998 = vmatpush1.xpose.msra.mxu0 0.0
    %999 = vmatprep.subr.mxu0 0.0
    %1000 = vmatpush1.xpose.msra.mxu0 0.0
    %1001 = vmatprep.subr.mxu0 0.0
    %1002 = vmatpush1.xpose.msra.mxu0 0.0
    %1003 = vmatprep.subr.mxu0 0.0
    %1004 = vmatpush1.xpose.msra.mxu0 0.0
    %1005 = vmatprep.subr.mxu0 0.0
    %1006 = vmatpush1.xpose.msra.mxu0 0.0
    %1007 = vmatprep.subr.mxu0 0.0
    %1008 = vmatpush1.xpose.msra.mxu0 0.0
    %1009 = vmatprep.subr.mxu0 0.0
    %1010 = vmatpush1.xpose.msra.mxu0 0.0
    %1011 = vmatprep.subr.mxu0 0.0
    %1012 = vmatpush1.xpose.msra.mxu0 %v981
    %1013 = vmatprep.subr.mxu0 0.0
    %1014 = vmatpush1.xpose.msra.mxu0 %v979
    %1015 = vmatprep.subr.mxu0 0.0
    %1016 = vmatpush2.xpose.msra.mxu0 0.0
    %1017 = vmatprep.subr.mxu0 0.0
    %1018 = vmatpush2.xpose.msra.mxu0 0.0
    %1019 = vmatprep.subr.mxu0 0.0
    %1020 = vmatpush2.xpose.msra.mxu0 0.0
    %1021 = vmatprep.subr.mxu0 0.0
    %1022 = vmatpush2.xpose.msra.mxu0 0.0
    %1023 = vmatprep.subr.mxu0 0.0
    %1024 = vmatpush2.xpose.msra.mxu0 0.0
    %1025 = vmatprep.subr.mxu0 0.0
    %1026 = vmatpush2.xpose.msra.mxu0 0.0
    %1027 = vmatprep.subr.mxu0 0.0
    %1028 = vmatpush2.xpose.msra.mxu0 0.0
    %1029 = vmatprep.subr.mxu0 0.0
    %1030 = vmatpush2.xpose.msra.mxu0 0.0
    %1031 = vmatprep.subr.mxu0 0.0
    %1032 = vmatpush2.xpose.msra.mxu0 0.0
    %1033 = vmatprep.subr.mxu0 0.0
    %1034 = vmatpush2.xpose.msra.mxu0 0.0
    %1035 = vmatprep.subr.mxu0 0.0
    %1036 = vmatpush2.xpose.msra.mxu0 0.0
    %1037 = vmatprep.subr.mxu0 0.0
    %1038 = vmatpush2.xpose.msra.mxu0 0.0
    %1039 = vmatprep.subr.mxu0 0.0
    %1040 = vmatpush2.xpose.msra.mxu0 0.0
    %1041 = vmatprep.subr.mxu0 0.0
    %1042 = vmatpush2.xpose.msra.mxu0 0.0
    %1043 = vmatprep.subr.mxu0 0.0
    %1044 = vmatpush2.xpose.msra.mxu0 0.0
    %1045 = vmatprep.subr.mxu0 0.0
    %1046 = vmatpush2.xpose.msra.mxu0 0.0
    %1047 = vmatprep.mubr.f32.mxu0 0.0
    %1048 = vmatmul.mubr.f32.gmra.mxu0 %v977
    %v1049 = vpop.f32.mrf.mxu0
    %v1050 = vadd.f32 0.0, %v1049
    %v1051 = vpop.f32.mrf.mxu0
    %1052 = vdwg.mxu0
    %v1053 = vsel %vm444, %v357, 0
    %v1055 = vsel %vm444, %v393, 0
    %v1057 = vsel %vm444, %v395, 0
    %1059 = vmatprep.subr.mxu0 0.0
    %1060 = vmatpush1.xpose.msra.mxu0 0.0
    %1061 = vmatprep.subr.mxu0 0.0
    %1062 = vmatpush1.xpose.msra.mxu0 0.0
    %1063 = vmatprep.subr.mxu0 0.0
    %1064 = vmatpush1.xpose.msra.mxu0 0.0
    %1065 = vmatprep.subr.mxu0 0.0
    %1066 = vmatpush1.xpose.msra.mxu0 0.0
    %1067 = vmatprep.subr.mxu0 0.0
    %1068 = vmatpush1.xpose.msra.mxu0 0.0
    %1069 = vmatprep.subr.mxu0 0.0
    %1070 = vmatpush1.xpose.msra.mxu0 0.0
    %1071 = vmatprep.subr.mxu0 0.0
    %1072 = vmatpush1.xpose.msra.mxu0 0.0
    %1073 = vmatprep.subr.mxu0 0.0
    %1074 = vmatpush1.xpose.msra.mxu0 0.0
    %1075 = vmatprep.subr.mxu0 0.0
    %1076 = vmatpush1.xpose.msra.mxu0 0.0
    %1077 = vmatprep.subr.mxu0 0.0
    %1078 = vmatpush1.xpose.msra.mxu0 0.0
    %1079 = vmatprep.subr.mxu0 0.0
    %1080 = vmatpush1.xpose.msra.mxu0 0.0
    %1081 = vmatprep.subr.mxu0 0.0
    %1082 = vmatpush1.xpose.msra.mxu0 0.0
    %1083 = vmatprep.subr.mxu0 0.0
    %1084 = vmatpush1.xpose.msra.mxu0 0.0
    %1085 = vmatprep.subr.mxu0 0.0
    %1086 = vmatpush1.xpose.msra.mxu0 0.0
    %1087 = vmatprep.subr.mxu0 0.0
    %1088 = vmatpush1.xpose.msra.mxu0 %v1057
    %1089 = vmatprep.subr.mxu0 0.0
    %1090 = vmatpush1.xpose.msra.mxu0 %v1055
    %1091 = vmatprep.subr.mxu0 0.0
    %1092 = vmatpush2.xpose.msra.mxu0 0.0
    %1093 = vmatprep.subr.mxu0 0.0
    %1094 = vmatpush2.xpose.msra.mxu0 0.0
    %1095 = vmatprep.subr.mxu0 0.0
    %1096 = vmatpush2.xpose.msra.mxu0 0.0
    %1097 = vmatprep.subr.mxu0 0.0
    %1098 = vmatpush2.xpose.msra.mxu0 0.0
    %1099 = vmatprep.subr.mxu0 0.0
    %1100 = vmatpush2.xpose.msra.mxu0 0.0
    %1101 = vmatprep.subr.mxu0 0.0
    %1102 = vmatpush2.xpose.msra.mxu0 0.0
    %1103 = vmatprep.subr.mxu0 0.0
    %1104 = vmatpush2.xpose.msra.mxu0 0.0
    %1105 = vmatprep.subr.mxu0 0.0
    %1106 = vmatpush2.xpose.msra.mxu0 0.0
    %1107 = vmatprep.subr.mxu0 0.0
    %1108 = vmatpush2.xpose.msra.mxu0 0.0
    %1109 = vmatprep.subr.mxu0 0.0
    %1110 = vmatpush2.xpose.msra.mxu0 0.0
    %1111 = vmatprep.subr.mxu0 0.0
    %1112 = vmatpush2.xpose.msra.mxu0 0.0
    %1113 = vmatprep.subr.mxu0 0.0
    %1114 = vmatpush2.xpose.msra.mxu0 0.0
    %1115 = vmatprep.subr.mxu0 0.0
    %1116 = vmatpush2.xpose.msra.mxu0 0.0
    %1117 = vmatprep.subr.mxu0 0.0
    %1118 = vmatpush2.xpose.msra.mxu0 0.0
    %1119 = vmatprep.subr.mxu0 0.0
    %1120 = vmatpush2.xpose.msra.mxu0 0.0
    %1121 = vmatprep.subr.mxu0 0.0
    %1122 = vmatpush2.xpose.msra.mxu0 0.0
    %1123 = vmatprep.mubr.f32.mxu0 0.0
    %1124 = vmatmul.mubr.f32.gmra.mxu0 %v1053
    %v1125 = vpop.f32.mrf.mxu0
    %v1126 = vadd.f32 0.0, %v1125
    %v1127 = vpop.f32.mrf.mxu0
    %1128 = vdwg.mxu0
    %v1129 = vsel %vm444, %v359, 0
    %v1131 = vsel %vm444, %v397, 0
    %v1133 = vsel %vm444, %v399, 0
    %1135 = vmatprep.subr.mxu0 0.0
    %1136 = vmatpush1.xpose.msra.mxu0 0.0
    %1137 = vmatprep.subr.mxu0 0.0
    %1138 = vmatpush1.xpose.msra.mxu0 0.0
    %1139 = vmatprep.subr.mxu0 0.0
    %1140 = vmatpush1.xpose.msra.mxu0 0.0
    %1141 = vmatprep.subr.mxu0 0.0
    %1142 = vmatpush1.xpose.msra.mxu0 0.0
    %1143 = vmatprep.subr.mxu0 0.0
    %1144 = vmatpush1.xpose.msra.mxu0 0.0
    %1145 = vmatprep.subr.mxu0 0.0
    %1146 = vmatpush1.xpose.msra.mxu0 0.0
    %1147 = vmatprep.subr.mxu0 0.0
    %1148 = vmatpush1.xpose.msra.mxu0 0.0
    %1149 = vmatprep.subr.mxu0 0.0
    %1150 = vmatpush1.xpose.msra.mxu0 0.0
    %1151 = vmatprep.subr.mxu0 0.0
    %1152 = vmatpush1.xpose.msra.mxu0 0.0
    %1153 = vmatprep.subr.mxu0 0.0
    %1154 = vmatpush1.xpose.msra.mxu0 0.0
    %1155 = vmatprep.subr.mxu0 0.0
    %1156 = vmatpush1.xpose.msra.mxu0 0.0
    %1157 = vmatprep.subr.mxu0 0.0
    %1158 = vmatpush1.xpose.msra.mxu0 0.0
    %1159 = vmatprep.subr.mxu0 0.0
    %1160 = vmatpush1.xpose.msra.mxu0 0.0
    %1161 = vmatprep.subr.mxu0 0.0
    %1162 = vmatpush1.xpose.msra.mxu0 0.0
    %1163 = vmatprep.subr.mxu0 0.0
    %1164 = vmatpush1.xpose.msra.mxu0 %v1133
    %1165 = vmatprep.subr.mxu0 0.0
    %1166 = vmatpush1.xpose.msra.mxu0 %v1131
    %1167 = vmatprep.subr.mxu0 0.0
    %1168 = vmatpush2.xpose.msra.mxu0 0.0
    %1169 = vmatprep.subr.mxu0 0.0
    %1170 = vmatpush2.xpose.msra.mxu0 0.0
    %1171 = vmatprep.subr.mxu0 0.0
    %1172 = vmatpush2.xpose.msra.mxu0 0.0
    %1173 = vmatprep.subr.mxu0 0.0
    %1174 = vmatpush2.xpose.msra.mxu0 0.0
    %1175 = vmatprep.subr.mxu0 0.0
    %1176 = vmatpush2.xpose.msra.mxu0 0.0
    %1177 = vmatprep.subr.mxu0 0.0
    %1178 = vmatpush2.xpose.msra.mxu0 0.0
    %1179 = vmatprep.subr.mxu0 0.0
    %1180 = vmatpush2.xpose.msra.mxu0 0.0
    %1181 = vmatprep.subr.mxu0 0.0
    %1182 = vmatpush2.xpose.msra.mxu0 0.0
    %1183 = vmatprep.subr.mxu0 0.0
    %1184 = vmatpush2.xpose.msra.mxu0 0.0
    %1185 = vmatprep.subr.mxu0 0.0
    %1186 = vmatpush2.xpose.msra.mxu0 0.0
    %1187 = vmatprep.subr.mxu0 0.0
    %1188 = vmatpush2.xpose.msra.mxu0 0.0
    %1189 = vmatprep.subr.mxu0 0.0
    %1190 = vmatpush2.xpose.msra.mxu0 0.0
    %1191 = vmatprep.subr.mxu0 0.0
    %1192 = vmatpush2.xpose.msra.mxu0 0.0
    %1193 = vmatprep.subr.mxu0 0.0
    %1194 = vmatpush2.xpose.msra.mxu0 0.0
    %1195 = vmatprep.subr.mxu0 0.0
    %1196 = vmatpush2.xpose.msra.mxu0 0.0
    %1197 = vmatprep.subr.mxu0 0.0
    %1198 = vmatpush2.xpose.msra.mxu0 0.0
    %1199 = vmatprep.mubr.f32.mxu0 0.0
    %1200 = vmatmul.mubr.f32.gmra.mxu0 %v1129
    %v1201 = vpop.f32.mrf.mxu0
    %v1202 = vadd.f32 0.0, %v1201
    %v1203 = vpop.f32.mrf.mxu0
    %1204 = vdwg.mxu0
    %v1205 = vsel %vm444, %v361, 0
    %v1207 = vsel %vm444, %v401, 0
    %v1209 = vsel %vm444, %v403, 0
    %1211 = vmatprep.subr.mxu0 0.0
    %1212 = vmatpush1.xpose.msra.mxu0 0.0
    %1213 = vmatprep.subr.mxu0 0.0
    %1214 = vmatpush1.xpose.msra.mxu0 0.0
    %1215 = vmatprep.subr.mxu0 0.0
    %1216 = vmatpush1.xpose.msra.mxu0 0.0
    %1217 = vmatprep.subr.mxu0 0.0
    %1218 = vmatpush1.xpose.msra.mxu0 0.0
    %1219 = vmatprep.subr.mxu0 0.0
    %1220 = vmatpush1.xpose.msra.mxu0 0.0
    %1221 = vmatprep.subr.mxu0 0.0
    %1222 = vmatpush1.xpose.msra.mxu0 0.0
    %1223 = vmatprep.subr.mxu0 0.0
    %1224 = vmatpush1.xpose.msra.mxu0 0.0
    %1225 = vmatprep.subr.mxu0 0.0
    %1226 = vmatpush1.xpose.msra.mxu0 0.0
    %1227 = vmatprep.subr.mxu0 0.0
    %1228 = vmatpush1.xpose.msra.mxu0 0.0
    %1229 = vmatprep.subr.mxu0 0.0
    %1230 = vmatpush1.xpose.msra.mxu0 0.0
    %1231 = vmatprep.subr.mxu0 0.0
    %1232 = vmatpush1.xpose.msra.mxu0 0.0
    %1233 = vmatprep.subr.mxu0 0.0
    %1234 = vmatpush1.xpose.msra.mxu0 0.0
    %1235 = vmatprep.subr.mxu0 0.0
    %1236 = vmatpush1.xpose.msra.mxu0 0.0
    %1237 = vmatprep.subr.mxu0 0.0
    %1238 = vmatpush1.xpose.msra.mxu0 0.0
    %1239 = vmatprep.subr.mxu0 0.0
    %1240 = vmatpush1.xpose.msra.mxu0 %v1209
    %1241 = vmatprep.subr.mxu0 0.0
    %1242 = vmatpush1.xpose.msra.mxu0 %v1207
    %1243 = vmatprep.subr.mxu0 0.0
    %1244 = vmatpush2.xpose.msra.mxu0 0.0
    %1245 = vmatprep.subr.mxu0 0.0
    %1246 = vmatpush2.xpose.msra.mxu0 0.0
    %1247 = vmatprep.subr.mxu0 0.0
    %1248 = vmatpush2.xpose.msra.mxu0 0.0
    %1249 = vmatprep.subr.mxu0 0.0
    %1250 = vmatpush2.xpose.msra.mxu0 0.0
    %1251 = vmatprep.subr.mxu0 0.0
    %1252 = vmatpush2.xpose.msra.mxu0 0.0
    %1253 = vmatprep.subr.mxu0 0.0
    %1254 = vmatpush2.xpose.msra.mxu0 0.0
    %1255 = vmatprep.subr.mxu0 0.0
    %1256 = vmatpush2.xpose.msra.mxu0 0.0
    %1257 = vmatprep.subr.mxu0 0.0
    %1258 = vmatpush2.xpose.msra.mxu0 0.0
    %1259 = vmatprep.subr.mxu0 0.0
    %1260 = vmatpush2.xpose.msra.mxu0 0.0
    %1261 = vmatprep.subr.mxu0 0.0
    %1262 = vmatpush2.xpose.msra.mxu0 0.0
    %1263 = vmatprep.subr.mxu0 0.0
    %1264 = vmatpush2.xpose.msra.mxu0 0.0
    %1265 = vmatprep.subr.mxu0 0.0
    %1266 = vmatpush2.xpose.msra.mxu0 0.0
    %1267 = vmatprep.subr.mxu0 0.0
    %1268 = vmatpush2.xpose.msra.mxu0 0.0
    %1269 = vmatprep.subr.mxu0 0.0
    %1270 = vmatpush2.xpose.msra.mxu0 0.0
    %1271 = vmatprep.subr.mxu0 0.0
    %1272 = vmatpush2.xpose.msra.mxu0 0.0
    %1273 = vmatprep.subr.mxu0 0.0
    %1274 = vmatpush2.xpose.msra.mxu0 0.0
    %1275 = vmatprep.mubr.f32.mxu0 0.0
    %1276 = vmatmul.mubr.f32.gmra.mxu0 %v1205
    %v1277 = vpop.f32.mrf.mxu0
    %v1278 = vadd.f32 0.0, %v1277
    %v1279 = vpop.f32.mrf.mxu0
    %1280 = vdwg.mxu0
    %v1281 = vsel %vm444, %v363, 0
    %v1283 = vsel %vm444, %v405, 0
    %v1285 = vsel %vm444, %v407, 0
    %1287 = vmatprep.subr.mxu0 0.0
    %1288 = vmatpush1.xpose.msra.mxu0 0.0
    %1289 = vmatprep.subr.mxu0 0.0
    %1290 = vmatpush1.xpose.msra.mxu0 0.0
    %1291 = vmatprep.subr.mxu0 0.0
    %1292 = vmatpush1.xpose.msra.mxu0 0.0
    %1293 = vmatprep.subr.mxu0 0.0
    %1294 = vmatpush1.xpose.msra.mxu0 0.0
    %1295 = vmatprep.subr.mxu0 0.0
    %1296 = vmatpush1.xpose.msra.mxu0 0.0
    %1297 = vmatprep.subr.mxu0 0.0
    %1298 = vmatpush1.xpose.msra.mxu0 0.0
    %1299 = vmatprep.subr.mxu0 0.0
    %1300 = vmatpush1.xpose.msra.mxu0 0.0
    %1301 = vmatprep.subr.mxu0 0.0
    %1302 = vmatpush1.xpose.msra.mxu0 0.0
    %1303 = vmatprep.subr.mxu0 0.0
    %1304 = vmatpush1.xpose.msra.mxu0 0.0
    %1305 = vmatprep.subr.mxu0 0.0
    %1306 = vmatpush1.xpose.msra.mxu0 0.0
    %1307 = vmatprep.subr.mxu0 0.0
    %1308 = vmatpush1.xpose.msra.mxu0 0.0
    %1309 = vmatprep.subr.mxu0 0.0
    %1310 = vmatpush1.xpose.msra.mxu0 0.0
    %1311 = vmatprep.subr.mxu0 0.0
    %1312 = vmatpush1.xpose.msra.mxu0 0.0
    %1313 = vmatprep.subr.mxu0 0.0
    %1314 = vmatpush1.xpose.msra.mxu0 0.0
    %1315 = vmatprep.subr.mxu0 0.0
    %1316 = vmatpush1.xpose.msra.mxu0 %v1285
    %1317 = vmatprep.subr.mxu0 0.0
    %1318 = vmatpush1.xpose.msra.mxu0 %v1283
    %1319 = vmatprep.subr.mxu0 0.0
    %1320 = vmatpush2.xpose.msra.mxu0 0.0
    %1321 = vmatprep.subr.mxu0 0.0
    %1322 = vmatpush2.xpose.msra.mxu0 0.0
    %1323 = vmatprep.subr.mxu0 0.0
    %1324 = vmatpush2.xpose.msra.mxu0 0.0
    %1325 = vmatprep.subr.mxu0 0.0
    %1326 = vmatpush2.xpose.msra.mxu0 0.0
    %1327 = vmatprep.subr.mxu0 0.0
    %1328 = vmatpush2.xpose.msra.mxu0 0.0
    %1329 = vmatprep.subr.mxu0 0.0
    %1330 = vmatpush2.xpose.msra.mxu0 0.0
    %1331 = vmatprep.subr.mxu0 0.0
    %1332 = vmatpush2.xpose.msra.mxu0 0.0
    %1333 = vmatprep.subr.mxu0 0.0
    %1334 = vmatpush2.xpose.msra.mxu0 0.0
    %1335 = vmatprep.subr.mxu0 0.0
    %1336 = vmatpush2.xpose.msra.mxu0 0.0
    %1337 = vmatprep.subr.mxu0 0.0
    %1338 = vmatpush2.xpose.msra.mxu0 0.0
    %1339 = vmatprep.subr.mxu0 0.0
    %1340 = vmatpush2.xpose.msra.mxu0 0.0
    %1341 = vmatprep.subr.mxu0 0.0
    %1342 = vmatpush2.xpose.msra.mxu0 0.0
    %1343 = vmatprep.subr.mxu0 0.0
    %1344 = vmatpush2.xpose.msra.mxu0 0.0
    %1345 = vmatprep.subr.mxu0 0.0
    %1346 = vmatpush2.xpose.msra.mxu0 0.0
    %1347 = vmatprep.subr.mxu0 0.0
    %1348 = vmatpush2.xpose.msra.mxu0 0.0
    %1349 = vmatprep.subr.mxu0 0.0
    %1350 = vmatpush2.xpose.msra.mxu0 0.0
    %1351 = vmatprep.mubr.f32.mxu0 0.0
    %1352 = vmatmul.mubr.f32.gmra.mxu0 %v1281
    %v1353 = vpop.f32.mrf.mxu0
    %v1354 = vadd.f32 0.0, %v1353
    %v1355 = vpop.f32.mrf.mxu0
    %1356 = vdwg.mxu0
    %v1357 = vmul.f32 %v518, 0.25
    %v1358 = vmul.f32 %v594, 0.25
    %v1359 = vmul.f32 %v670, 0.25
    %v1360 = vmul.f32 %v746, 0.25
    %v1361 = vmul.f32 %v822, 0.25
    %v1362 = vmul.f32 %v898, 0.25
    %v1363 = vmul.f32 %v974, 0.25
    %v1364 = vmul.f32 %v1050, 0.25
    %v1365 = vmul.f32 %v1126, 0.25
    %v1366 = vmul.f32 %v1202, 0.25
    %v1367 = vmul.f32 %v1278, 0.25
    %v1368 = vmul.f32 %v1354, 0.25
    %v1369 = vsel %vm444, %v1357, -inf
    %1370 = vmax.xlane.f32.xlu0 %v1369
    %v1371 = vpop.xlane.xlu0 %1370
    %v1372 = vsel %vm444, %v1358, -inf
    %1373 = vmax.xlane.f32.xlu0 %v1372
    %v1374 = vpop.xlane.xlu0 %1373
    %v1375 = vsel %vm444, %v1359, -inf
    %1376 = vmax.xlane.f32.xlu0 %v1375
    %v1377 = vpop.xlane.xlu0 %1376
    %v1378 = vsel %vm444, %v1360, -inf
    %1379 = vmax.xlane.f32.xlu0 %v1378
    %v1380 = vpop.xlane.xlu0 %1379
    %v1381 = vsel %vm444, %v1361, -inf
    %1382 = vmax.xlane.f32.xlu0 %v1381
    %v1383 = vpop.xlane.xlu0 %1382
    %v1384 = vsel %vm444, %v1362, -inf
    %1385 = vmax.xlane.f32.xlu0 %v1384
    %v1386 = vpop.xlane.xlu0 %1385
    %v1387 = vsel %vm444, %v1363, -inf
    %1388 = vmax.xlane.f32.xlu0 %v1387
    %v1389 = vpop.xlane.xlu0 %1388
    %v1390 = vsel %vm444, %v1364, -inf
    %1391 = vmax.xlane.f32.xlu0 %v1390
    %v1392 = vpop.xlane.xlu0 %1391
    %v1393 = vsel %vm444, %v1365, -inf
    %1394 = vmax.xlane.f32.xlu0 %v1393
    %v1395 = vpop.xlane.xlu0 %1394
    %v1396 = vsel %vm444, %v1366, -inf
    %1397 = vmax.xlane.f32.xlu0 %v1396
    %v1398 = vpop.xlane.xlu0 %1397
    %v1399 = vsel %vm444, %v1367, -inf
    %1400 = vmax.xlane.f32.xlu0 %v1399
    %v1401 = vpop.xlane.xlu0 %1400
    %v1402 = vsel %vm444, %v1368, -inf
    %1403 = vmax.xlane.f32.xlu0 %v1402
    %v1404 = vpop.xlane.xlu0 %1403
    %v1405 = vsub.f32 %v1357, %v1371
    %v1406 = vsub.f32 %v1358, %v1374
    %v1407 = vsub.f32 %v1359, %v1377
    %v1408 = vsub.f32 %v1360, %v1380
    %v1409 = vsub.f32 %v1361, %v1383
    %v1410 = vsub.f32 %v1362, %v1386
    %v1411 = vsub.f32 %v1363, %v1389
    %v1412 = vsub.f32 %v1364, %v1392
    %v1413 = vsub.f32 %v1365, %v1395
    %v1414 = vsub.f32 %v1366, %v1398
    %v1415 = vsub.f32 %v1367, %v1401
    %v1416 = vsub.f32 %v1368, %v1404
    %v1417 = vmul.f32 %v1405, 1.442695
    %v1418 = vpow.pop %v1417
    %v1419 = vmul.f32 %v1406, 1.442695
    %v1420 = vpow.pop %v1419
    %v1421 = vmul.f32 %v1407, 1.442695
    %v1422 = vpow.pop %v1421
    %v1423 = vmul.f32 %v1408, 1.442695
    %v1424 = vpow.pop %v1423
    %v1425 = vmul.f32 %v1409, 1.442695
    %v1426 = vpow.pop %v1425
    %v1427 = vmul.f32 %v1410, 1.442695
    %v1428 = vpow.pop %v1427
    %v1429 = vmul.f32 %v1411, 1.442695
    %v1430 = vpow.pop %v1429
    %v1431 = vmul.f32 %v1412, 1.442695
    %v1432 = vpow.pop %v1431
    %v1433 = vmul.f32 %v1413, 1.442695
    %v1434 = vpow.pop %v1433
    %v1435 = vmul.f32 %v1414, 1.442695
    %v1436 = vpow.pop %v1435
    %v1437 = vmul.f32 %v1415, 1.442695
    %v1438 = vpow.pop %v1437
    %v1439 = vmul.f32 %v1416, 1.442695
    %v1440 = vpow.pop %v1439
    %v1441 = vsel %vm444, %v1418, 0.0
    %1442 = vadd.xlane.f32.xlu0 %v1441
    %v1443 = vpop.xlane.xlu0 %1442
    %v1444 = vsel %vm444, %v1420, 0.0
    %1445 = vadd.xlane.f32.xlu0 %v1444
    %v1446 = vpop.xlane.xlu0 %1445
    %v1447 = vsel %vm444, %v1422, 0.0
    %1448 = vadd.xlane.f32.xlu0 %v1447
    %v1449 = vpop.xlane.xlu0 %1448
    %v1450 = vsel %vm444, %v1424, 0.0
    %1451 = vadd.xlane.f32.xlu0 %v1450
    %v1452 = vpop.xlane.xlu0 %1451
    %v1453 = vsel %vm444, %v1426, 0.0
    %1454 = vadd.xlane.f32.xlu0 %v1453
    %v1455 = vpop.xlane.xlu0 %1454
    %v1456 = vsel %vm444, %v1428, 0.0
    %1457 = vadd.xlane.f32.xlu0 %v1456
    %v1458 = vpop.xlane.xlu0 %1457
    %v1459 = vsel %vm444, %v1430, 0.0
    %1460 = vadd.xlane.f32.xlu0 %v1459
    %v1461 = vpop.xlane.xlu0 %1460
    %v1462 = vsel %vm444, %v1432, 0.0
    %1463 = vadd.xlane.f32.xlu0 %v1462
    %v1464 = vpop.xlane.xlu0 %1463
    %v1465 = vsel %vm444, %v1434, 0.0
    %1466 = vadd.xlane.f32.xlu0 %v1465
    %v1467 = vpop.xlane.xlu0 %1466
    %v1468 = vsel %vm444, %v1436, 0.0
    %1469 = vadd.xlane.f32.xlu0 %v1468
    %v1470 = vpop.xlane.xlu0 %1469
    %v1471 = vsel %vm444, %v1438, 0.0
    %1472 = vadd.xlane.f32.xlu0 %v1471
    %v1473 = vpop.xlane.xlu0 %1472
    %v1474 = vsel %vm444, %v1440, 0.0
    %1475 = vadd.xlane.f32.xlu0 %v1474
    %v1476 = vpop.xlane.xlu0 %1475
    %v1477 = vrcp.pop %v1443
    %v1478 = vrcp.pop %v1446
    %v1479 = vrcp.pop %v1449
    %v1480 = vrcp.pop %v1452
    %v1481 = vrcp.pop %v1455
    %v1482 = vrcp.pop %v1458
    %v1483 = vrcp.pop %v1461
    %v1484 = vrcp.pop %v1464
    %v1485 = vrcp.pop %v1467
    %v1486 = vrcp.pop %v1470
    %v1487 = vrcp.pop %v1473
    %v1488 = vrcp.pop %v1476
    %v1489 = vmul.f32 %v1418, %v1477
    %v1490 = vmul.f32 %v1420, %v1478
    %v1491 = vmul.f32 %v1422, %v1479
    %v1492 = vmul.f32 %v1424, %v1480
    %v1493 = vmul.f32 %v1426, %v1481
    %v1494 = vmul.f32 %v1428, %v1482
    %v1495 = vmul.f32 %v1430, %v1483
    %v1496 = vmul.f32 %v1432, %v1484
    %v1497 = vmul.f32 %v1434, %v1485
    %v1498 = vmul.f32 %v1436, %v1486
    %v1499 = vmul.f32 %v1438, %v1487
    %v1500 = vmul.f32 %v1440, %v1488
    %1501 = vrot.lane.b32.xlu0 %v320, 32
    %v1502 = vpop.permute.xlu0 %1501
    %1503 = vrot.lane.b32.xlu0 %v326, 32
    %v1504 = vpop.permute.xlu0 %1503
    %v1508 = vsel %vm444, %v1489, 0
    %1510 = vmatprep.subr.mxu0 0.0
    %1511 = vmatpush1.msra.mxu0 0.0
    %1512 = vmatprep.subr.mxu0 0.0
    %1513 = vmatpush1.msra.mxu0 0.0
    %1514 = vmatprep.subr.mxu0 0.0
    %1515 = vmatpush1.msra.mxu0 0.0
    %1516 = vmatprep.subr.mxu0 0.0
    %1517 = vmatpush1.msra.mxu0 0.0
    %1518 = vmatprep.subr.mxu0 0.0
    %1519 = vmatpush1.msra.mxu0 0.0
    %1520 = vmatprep.subr.mxu0 0.0
    %1521 = vmatpush1.msra.mxu0 0.0
    %1522 = vmatprep.subr.mxu0 0.0
    %1523 = vmatpush1.msra.mxu0 0.0
    %1524 = vmatprep.subr.mxu0 0.0
    %1525 = vmatpush1.msra.mxu0 0.0
    %1526 = vmatprep.subr.mxu0 0.0
    %1527 = vmatpush1.msra.mxu0 0.0
    %1528 = vmatprep.subr.mxu0 0.0
    %1529 = vmatpush1.msra.mxu0 0.0
    %1530 = vmatprep.subr.mxu0 0.0
    %1531 = vmatpush1.msra.mxu0 0.0
    %1532 = vmatprep.subr.mxu0 0.0
    %1533 = vmatpush1.msra.mxu0 0.0
    %1534 = vmatprep.subr.mxu0 0.0
    %1535 = vmatpush1.msra.mxu0 0.0
    %1536 = vmatprep.subr.mxu0 0.0
    %1537 = vmatpush1.msra.mxu0 0.0
    %1538 = vmatprep.subr.mxu0 0.0
    %1539 = vmatpush1.msra.mxu0 %v1504
    %1540 = vmatprep.subr.mxu0 0.0
    %1541 = vmatpush1.msra.mxu0 %v1502
    %1542 = vmatprep.subr.mxu0 0.0
    %1543 = vmatpush2.msra.mxu0 0.0
    %1544 = vmatprep.subr.mxu0 0.0
    %1545 = vmatpush2.msra.mxu0 0.0
    %1546 = vmatprep.subr.mxu0 0.0
    %1547 = vmatpush2.msra.mxu0 0.0
    %1548 = vmatprep.subr.mxu0 0.0
    %1549 = vmatpush2.msra.mxu0 0.0
    %1550 = vmatprep.subr.mxu0 0.0
    %1551 = vmatpush2.msra.mxu0 0.0
    %1552 = vmatprep.subr.mxu0 0.0
    %1553 = vmatpush2.msra.mxu0 0.0
    %1554 = vmatprep.subr.mxu0 0.0
    %1555 = vmatpush2.msra.mxu0 0.0
    %1556 = vmatprep.subr.mxu0 0.0
    %1557 = vmatpush2.msra.mxu0 0.0
    %1558 = vmatprep.subr.mxu0 0.0
    %1559 = vmatpush2.msra.mxu0 0.0
    %1560 = vmatprep.subr.mxu0 0.0
    %1561 = vmatpush2.msra.mxu0 0.0
    %1562 = vmatprep.subr.mxu0 0.0
    %1563 = vmatpush2.msra.mxu0 0.0
    %1564 = vmatprep.subr.mxu0 0.0
    %1565 = vmatpush2.msra.mxu0 0.0
    %1566 = vmatprep.subr.mxu0 0.0
    %1567 = vmatpush2.msra.mxu0 0.0
    %1568 = vmatprep.subr.mxu0 0.0
    %1569 = vmatpush2.msra.mxu0 0.0
    %1570 = vmatprep.subr.mxu0 0.0
    %1571 = vmatpush2.msra.mxu0 0.0
    %1572 = vmatprep.subr.mxu0 0.0
    %1573 = vmatpush2.msra.mxu0 0.0
    %1574 = vmatprep.mubr.f32.mxu0 0.0
    %1575 = vmatmul.mubr.f32.gmra.mxu0 %v1508
    %v1576 = vpop.f32.mrf.mxu0
    %v1577 = vadd.f32 0.0, %v1576
    %v1578 = vpop.f32.mrf.mxu0
    %1579 = vdwg.mxu0
    %1580 = vrot.lane.b32.xlu0 %v332, 32
    %v1581 = vpop.permute.xlu0 %1580
    %1582 = vrot.lane.b32.xlu0 %v338, 32
    %v1583 = vpop.permute.xlu0 %1582
    %v1587 = vsel %vm444, %v1490, 0
    %1589 = vmatprep.subr.mxu0 0.0
    %1590 = vmatpush1.msra.mxu0 0.0
    %1591 = vmatprep.subr.mxu0 0.0
    %1592 = vmatpush1.msra.mxu0 0.0
    %1593 = vmatprep.subr.mxu0 0.0
    %1594 = vmatpush1.msra.mxu0 0.0
    %1595 = vmatprep.subr.mxu0 0.0
    %1596 = vmatpush1.msra.mxu0 0.0
    %1597 = vmatprep.subr.mxu0 0.0
    %1598 = vmatpush1.msra.mxu0 0.0
    %1599 = vmatprep.subr.mxu0 0.0
    %1600 = vmatpush1.msra.mxu0 0.0
    %1601 = vmatprep.subr.mxu0 0.0
    %1602 = vmatpush1.msra.mxu0 0.0
    %1603 = vmatprep.subr.mxu0 0.0
    %1604 = vmatpush1.msra.mxu0 0.0
    %1605 = vmatprep.subr.mxu0 0.0
    %1606 = vmatpush1.msra.mxu0 0.0
    %1607 = vmatprep.subr.mxu0 0.0
    %1608 = vmatpush1.msra.mxu0 0.0
    %1609 = vmatprep.subr.mxu0 0.0
    %1610 = vmatpush1.msra.mxu0 0.0
    %1611 = vmatprep.subr.mxu0 0.0
    %1612 = vmatpush1.msra.mxu0 0.0
    %1613 = vmatprep.subr.mxu0 0.0
    %1614 = vmatpush1.msra.mxu0 0.0
    %1615 = vmatprep.subr.mxu0 0.0
    %1616 = vmatpush1.msra.mxu0 0.0
    %1617 = vmatprep.subr.mxu0 0.0
    %1618 = vmatpush1.msra.mxu0 %v1583
    %1619 = vmatprep.subr.mxu0 0.0
    %1620 = vmatpush1.msra.mxu0 %v1581
    %1621 = vmatprep.subr.mxu0 0.0
    %1622 = vmatpush2.msra.mxu0 0.0
    %1623 = vmatprep.subr.mxu0 0.0
    %1624 = vmatpush2.msra.mxu0 0.0
    %1625 = vmatprep.subr.mxu0 0.0
    %1626 = vmatpush2.msra.mxu0 0.0
    %1627 = vmatprep.subr.mxu0 0.0
    %1628 = vmatpush2.msra.mxu0 0.0
    %1629 = vmatprep.subr.mxu0 0.0
    %1630 = vmatpush2.msra.mxu0 0.0
    %1631 = vmatprep.subr.mxu0 0.0
    %1632 = vmatpush2.msra.mxu0 0.0
    %1633 = vmatprep.subr.mxu0 0.0
    %1634 = vmatpush2.msra.mxu0 0.0
    %1635 = vmatprep.subr.mxu0 0.0
    %1636 = vmatpush2.msra.mxu0 0.0
    %1637 = vmatprep.subr.mxu0 0.0
    %1638 = vmatpush2.msra.mxu0 0.0
    %1639 = vmatprep.subr.mxu0 0.0
    %1640 = vmatpush2.msra.mxu0 0.0
    %1641 = vmatprep.subr.mxu0 0.0
    %1642 = vmatpush2.msra.mxu0 0.0
    %1643 = vmatprep.subr.mxu0 0.0
    %1644 = vmatpush2.msra.mxu0 0.0
    %1645 = vmatprep.subr.mxu0 0.0
    %1646 = vmatpush2.msra.mxu0 0.0
    %1647 = vmatprep.subr.mxu0 0.0
    %1648 = vmatpush2.msra.mxu0 0.0
    %1649 = vmatprep.subr.mxu0 0.0
    %1650 = vmatpush2.msra.mxu0 0.0
    %1651 = vmatprep.subr.mxu0 0.0
    %1652 = vmatpush2.msra.mxu0 0.0
    %1653 = vmatprep.mubr.f32.mxu0 0.0
    %1654 = vmatmul.mubr.f32.gmra.mxu0 %v1587
    %v1655 = vpop.f32.mrf.mxu0
    %v1656 = vadd.f32 0.0, %v1655
    %v1657 = vpop.f32.mrf.mxu0
    %1658 = vdwg.mxu0
    %1659 = vrot.lane.b32.xlu0 %v369, 32
    %v1660 = vpop.permute.xlu0 %1659
    %1661 = vrot.lane.b32.xlu0 %v371, 32
    %v1662 = vpop.permute.xlu0 %1661
    %v1666 = vsel %vm444, %v1491, 0
    %1668 = vmatprep.subr.mxu0 0.0
    %1669 = vmatpush1.msra.mxu0 0.0
    %1670 = vmatprep.subr.mxu0 0.0
    %1671 = vmatpush1.msra.mxu0 0.0
    %1672 = vmatprep.subr.mxu0 0.0
    %1673 = vmatpush1.msra.mxu0 0.0
    %1674 = vmatprep.subr.mxu0 0.0
    %1675 = vmatpush1.msra.mxu0 0.0
    %1676 = vmatprep.subr.mxu0 0.0
    %1677 = vmatpush1.msra.mxu0 0.0
    %1678 = vmatprep.subr.mxu0 0.0
    %1679 = vmatpush1.msra.mxu0 0.0
    %1680 = vmatprep.subr.mxu0 0.0
    %1681 = vmatpush1.msra.mxu0 0.0
    %1682 = vmatprep.subr.mxu0 0.0
    %1683 = vmatpush1.msra.mxu0 0.0
    %1684 = vmatprep.subr.mxu0 0.0
    %1685 = vmatpush1.msra.mxu0 0.0
    %1686 = vmatprep.subr.mxu0 0.0
    %1687 = vmatpush1.msra.mxu0 0.0
    %1688 = vmatprep.subr.mxu0 0.0
    %1689 = vmatpush1.msra.mxu0 0.0
    %1690 = vmatprep.subr.mxu0 0.0
    %1691 = vmatpush1.msra.mxu0 0.0
    %1692 = vmatprep.subr.mxu0 0.0
    %1693 = vmatpush1.msra.mxu0 0.0
    %1694 = vmatprep.subr.mxu0 0.0
    %1695 = vmatpush1.msra.mxu0 0.0
    %1696 = vmatprep.subr.mxu0 0.0
    %1697 = vmatpush1.msra.mxu0 %v1662
    %1698 = vmatprep.subr.mxu0 0.0
    %1699 = vmatpush1.msra.mxu0 %v1660
    %1700 = vmatprep.subr.mxu0 0.0
    %1701 = vmatpush2.msra.mxu0 0.0
    %1702 = vmatprep.subr.mxu0 0.0
    %1703 = vmatpush2.msra.mxu0 0.0
    %1704 = vmatprep.subr.mxu0 0.0
    %1705 = vmatpush2.msra.mxu0 0.0
    %1706 = vmatprep.subr.mxu0 0.0
    %1707 = vmatpush2.msra.mxu0 0.0
    %1708 = vmatprep.subr.mxu0 0.0
    %1709 = vmatpush2.msra.mxu0 0.0
    %1710 = vmatprep.subr.mxu0 0.0
    %1711 = vmatpush2.msra.mxu0 0.0
    %1712 = vmatprep.subr.mxu0 0.0
    %1713 = vmatpush2.msra.mxu0 0.0
    %1714 = vmatprep.subr.mxu0 0.0
    %1715 = vmatpush2.msra.mxu0 0.0
    %1716 = vmatprep.subr.mxu0 0.0
    %1717 = vmatpush2.msra.mxu0 0.0
    %1718 = vmatprep.subr.mxu0 0.0
    %1719 = vmatpush2.msra.mxu0 0.0
    %1720 = vmatprep.subr.mxu0 0.0
    %1721 = vmatpush2.msra.mxu0 0.0
    %1722 = vmatprep.subr.mxu0 0.0
    %1723 = vmatpush2.msra.mxu0 0.0
    %1724 = vmatprep.subr.mxu0 0.0
    %1725 = vmatpush2.msra.mxu0 0.0
    %1726 = vmatprep.subr.mxu0 0.0
    %1727 = vmatpush2.msra.mxu0 0.0
    %1728 = vmatprep.subr.mxu0 0.0
    %1729 = vmatpush2.msra.mxu0 0.0
    %1730 = vmatprep.subr.mxu0 0.0
    %1731 = vmatpush2.msra.mxu0 0.0
    %1732 = vmatprep.mubr.f32.mxu0 0.0
    %1733 = vmatmul.mubr.f32.gmra.mxu0 %v1666
    %v1734 = vpop.f32.mrf.mxu0
    %v1735 = vadd.f32 0.0, %v1734
    %v1736 = vpop.f32.mrf.mxu0
    %1737 = vdwg.mxu0
    %1738 = vrot.lane.b32.xlu0 %v373, 32
    %v1739 = vpop.permute.xlu0 %1738
    %1740 = vrot.lane.b32.xlu0 %v375, 32
    %v1741 = vpop.permute.xlu0 %1740
    %v1745 = vsel %vm444, %v1492, 0
    %1747 = vmatprep.subr.mxu0 0.0
    %1748 = vmatpush1.msra.mxu0 0.0
    %1749 = vmatprep.subr.mxu0 0.0
    %1750 = vmatpush1.msra.mxu0 0.0
    %1751 = vmatprep.subr.mxu0 0.0
    %1752 = vmatpush1.msra.mxu0 0.0
    %1753 = vmatprep.subr.mxu0 0.0
    %1754 = vmatpush1.msra.mxu0 0.0
    %1755 = vmatprep.subr.mxu0 0.0
    %1756 = vmatpush1.msra.mxu0 0.0
    %1757 = vmatprep.subr.mxu0 0.0
    %1758 = vmatpush1.msra.mxu0 0.0
    %1759 = vmatprep.subr.mxu0 0.0
    %1760 = vmatpush1.msra.mxu0 0.0
    %1761 = vmatprep.subr.mxu0 0.0
    %1762 = vmatpush1.msra.mxu0 0.0
    %1763 = vmatprep.subr.mxu0 0.0
    %1764 = vmatpush1.msra.mxu0 0.0
    %1765 = vmatprep.subr.mxu0 0.0
    %1766 = vmatpush1.msra.mxu0 0.0
    %1767 = vmatprep.subr.mxu0 0.0
    %1768 = vmatpush1.msra.mxu0 0.0
    %1769 = vmatprep.subr.mxu0 0.0
    %1770 = vmatpush1.msra.mxu0 0.0
    %1771 = vmatprep.subr.mxu0 0.0
    %1772 = vmatpush1.msra.mxu0 0.0
    %1773 = vmatprep.subr.mxu0 0.0
    %1774 = vmatpush1.msra.mxu0 0.0
    %1775 = vmatprep.subr.mxu0 0.0
    %1776 = vmatpush1.msra.mxu0 %v1741
    %1777 = vmatprep.subr.mxu0 0.0
    %1778 = vmatpush1.msra.mxu0 %v1739
    %1779 = vmatprep.subr.mxu0 0.0
    %1780 = vmatpush2.msra.mxu0 0.0
    %1781 = vmatprep.subr.mxu0 0.0
    %1782 = vmatpush2.msra.mxu0 0.0
    %1783 = vmatprep.subr.mxu0 0.0
    %1784 = vmatpush2.msra.mxu0 0.0
    %1785 = vmatprep.subr.mxu0 0.0
    %1786 = vmatpush2.msra.mxu0 0.0
    %1787 = vmatprep.subr.mxu0 0.0
    %1788 = vmatpush2.msra.mxu0 0.0
    %1789 = vmatprep.subr.mxu0 0.0
    %1790 = vmatpush2.msra.mxu0 0.0
    %1791 = vmatprep.subr.mxu0 0.0
    %1792 = vmatpush2.msra.mxu0 0.0
    %1793 = vmatprep.subr.mxu0 0.0
    %1794 = vmatpush2.msra.mxu0 0.0
    %1795 = vmatprep.subr.mxu0 0.0
    %1796 = vmatpush2.msra.mxu0 0.0
    %1797 = vmatprep.subr.mxu0 0.0
    %1798 = vmatpush2.msra.mxu0 0.0
    %1799 = vmatprep.subr.mxu0 0.0
    %1800 = vmatpush2.msra.mxu0 0.0
    %1801 = vmatprep.subr.mxu0 0.0
    %1802 = vmatpush2.msra.mxu0 0.0
    %1803 = vmatprep.subr.mxu0 0.0
    %1804 = vmatpush2.msra.mxu0 0.0
    %1805 = vmatprep.subr.mxu0 0.0
    %1806 = vmatpush2.msra.mxu0 0.0
    %1807 = vmatprep.subr.mxu0 0.0
    %1808 = vmatpush2.msra.mxu0 0.0
    %1809 = vmatprep.subr.mxu0 0.0
    %1810 = vmatpush2.msra.mxu0 0.0
    %1811 = vmatprep.mubr.f32.mxu0 0.0
    %1812 = vmatmul.mubr.f32.gmra.mxu0 %v1745
    %v1813 = vpop.f32.mrf.mxu0
    %v1814 = vadd.f32 0.0, %v1813
    %v1815 = vpop.f32.mrf.mxu0
    %1816 = vdwg.mxu0
    %1817 = vrot.lane.b32.xlu0 %v413, 32
    %v1818 = vpop.permute.xlu0 %1817
    %1819 = vrot.lane.b32.xlu0 %v415, 32
    %v1820 = vpop.permute.xlu0 %1819
    %v1824 = vsel %vm444, %v1493, 0
    %1826 = vmatprep.subr.mxu0 0.0
    %1827 = vmatpush1.msra.mxu0 0.0
    %1828 = vmatprep.subr.mxu0 0.0
    %1829 = vmatpush1.msra.mxu0 0.0
    %1830 = vmatprep.subr.mxu0 0.0
    %1831 = vmatpush1.msra.mxu0 0.0
    %1832 = vmatprep.subr.mxu0 0.0
    %1833 = vmatpush1.msra.mxu0 0.0
    %1834 = vmatprep.subr.mxu0 0.0
    %1835 = vmatpush1.msra.mxu0 0.0
    %1836 = vmatprep.subr.mxu0 0.0
    %1837 = vmatpush1.msra.mxu0 0.0
    %1838 = vmatprep.subr.mxu0 0.0
    %1839 = vmatpush1.msra.mxu0 0.0
    %1840 = vmatprep.subr.mxu0 0.0
    %1841 = vmatpush1.msra.mxu0 0.0
    %1842 = vmatprep.subr.mxu0 0.0
    %1843 = vmatpush1.msra.mxu0 0.0
    %1844 = vmatprep.subr.mxu0 0.0
    %1845 = vmatpush1.msra.mxu0 0.0
    %1846 = vmatprep.subr.mxu0 0.0
    %1847 = vmatpush1.msra.mxu0 0.0
    %1848 = vmatprep.subr.mxu0 0.0
    %1849 = vmatpush1.msra.mxu0 0.0
    %1850 = vmatprep.subr.mxu0 0.0
    %1851 = vmatpush1.msra.mxu0 0.0
    %1852 = vmatprep.subr.mxu0 0.0
    %1853 = vmatpush1.msra.mxu0 0.0
    %1854 = vmatprep.subr.mxu0 0.0
    %1855 = vmatpush1.msra.mxu0 %v1820
    %1856 = vmatprep.subr.mxu0 0.0
    %1857 = vmatpush1.msra.mxu0 %v1818
    %1858 = vmatprep.subr.mxu0 0.0
    %1859 = vmatpush2.msra.mxu0 0.0
    %1860 = vmatprep.subr.mxu0 0.0
    %1861 = vmatpush2.msra.mxu0 0.0
    %1862 = vmatprep.subr.mxu0 0.0
    %1863 = vmatpush2.msra.mxu0 0.0
    %1864 = vmatprep.subr.mxu0 0.0
    %1865 = vmatpush2.msra.mxu0 0.0
    %1866 = vmatprep.subr.mxu0 0.0
    %1867 = vmatpush2.msra.mxu0 0.0
    %1868 = vmatprep.subr.mxu0 0.0
    %1869 = vmatpush2.msra.mxu0 0.0
    %1870 = vmatprep.subr.mxu0 0.0
    %1871 = vmatpush2.msra.mxu0 0.0
    %1872 = vmatprep.subr.mxu0 0.0
    %1873 = vmatpush2.msra.mxu0 0.0
    %1874 = vmatprep.subr.mxu0 0.0
    %1875 = vmatpush2.msra.mxu0 0.0
    %1876 = vmatprep.subr.mxu0 0.0
    %1877 = vmatpush2.msra.mxu0 0.0
    %1878 = vmatprep.subr.mxu0 0.0
    %1879 = vmatpush2.msra.mxu0 0.0
    %1880 = vmatprep.subr.mxu0 0.0
    %1881 = vmatpush2.msra.mxu0 0.0
    %1882 = vmatprep.subr.mxu0 0.0
    %1883 = vmatpush2.msra.mxu0 0.0
    %1884 = vmatprep.subr.mxu0 0.0
    %1885 = vmatpush2.msra.mxu0 0.0
    %1886 = vmatprep.subr.mxu0 0.0
    %1887 = vmatpush2.msra.mxu0 0.0
    %1888 = vmatprep.subr.mxu0 0.0
    %1889 = vmatpush2.msra.mxu0 0.0
    %1890 = vmatprep.mubr.f32.mxu0 0.0
    %1891 = vmatmul.mubr.f32.gmra.mxu0 %v1824
    %v1892 = vpop.f32.mrf.mxu0
    %v1893 = vadd.f32 0.0, %v1892
    %v1894 = vpop.f32.mrf.mxu0
    %1895 = vdwg.mxu0
    %1896 = vrot.lane.b32.xlu0 %v417, 32
    %v1897 = vpop.permute.xlu0 %1896
    %1898 = vrot.lane.b32.xlu0 %v419, 32
    %v1899 = vpop.permute.xlu0 %1898
    %v1903 = vsel %vm444, %v1494, 0
    %1905 = vmatprep.subr.mxu0 0.0
    %1906 = vmatpush1.msra.mxu0 0.0
    %1907 = vmatprep.subr.mxu0 0.0
    %1908 = vmatpush1.msra.mxu0 0.0
    %1909 = vmatprep.subr.mxu0 0.0
    %1910 = vmatpush1.msra.mxu0 0.0
    %1911 = vmatprep.subr.mxu0 0.0
    %1912 = vmatpush1.msra.mxu0 0.0
    %1913 = vmatprep.subr.mxu0 0.0
    %1914 = vmatpush1.msra.mxu0 0.0
    %1915 = vmatprep.subr.mxu0 0.0
    %1916 = vmatpush1.msra.mxu0 0.0
    %1917 = vmatprep.subr.mxu0 0.0
    %1918 = vmatpush1.msra.mxu0 0.0
    %1919 = vmatprep.subr.mxu0 0.0
    %1920 = vmatpush1.msra.mxu0 0.0
    %1921 = vmatprep.subr.mxu0 0.0
    %1922 = vmatpush1.msra.mxu0 0.0
    %1923 = vmatprep.subr.mxu0 0.0
    %1924 = vmatpush1.msra.mxu0 0.0
    %1925 = vmatprep.subr.mxu0 0.0
    %1926 = vmatpush1.msra.mxu0 0.0
    %1927 = vmatprep.subr.mxu0 0.0
    %1928 = vmatpush1.msra.mxu0 0.0
    %1929 = vmatprep.subr.mxu0 0.0
    %1930 = vmatpush1.msra.mxu0 0.0
    %1931 = vmatprep.subr.mxu0 0.0
    %1932 = vmatpush1.msra.mxu0 0.0
    %1933 = vmatprep.subr.mxu0 0.0
    %1934 = vmatpush1.msra.mxu0 %v1899
    %1935 = vmatprep.subr.mxu0 0.0
    %1936 = vmatpush1.msra.mxu0 %v1897
    %1937 = vmatprep.subr.mxu0 0.0
    %1938 = vmatpush2.msra.mxu0 0.0
    %1939 = vmatprep.subr.mxu0 0.0
    %1940 = vmatpush2.msra.mxu0 0.0
    %1941 = vmatprep.subr.mxu0 0.0
    %1942 = vmatpush2.msra.mxu0 0.0
    %1943 = vmatprep.subr.mxu0 0.0
    %1944 = vmatpush2.msra.mxu0 0.0
    %1945 = vmatprep.subr.mxu0 0.0
    %1946 = vmatpush2.msra.mxu0 0.0
    %1947 = vmatprep.subr.mxu0 0.0
    %1948 = vmatpush2.msra.mxu0 0.0
    %1949 = vmatprep.subr.mxu0 0.0
    %1950 = vmatpush2.msra.mxu0 0.0
    %1951 = vmatprep.subr.mxu0 0.0
    %1952 = vmatpush2.msra.mxu0 0.0
    %1953 = vmatprep.subr.mxu0 0.0
    %1954 = vmatpush2.msra.mxu0 0.0
    %1955 = vmatprep.subr.mxu0 0.0
    %1956 = vmatpush2.msra.mxu0 0.0
    %1957 = vmatprep.subr.mxu0 0.0
    %1958 = vmatpush2.msra.mxu0 0.0
    %1959 = vmatprep.subr.mxu0 0.0
    %1960 = vmatpush2.msra.mxu0 0.0
    %1961 = vmatprep.subr.mxu0 0.0
    %1962 = vmatpush2.msra.mxu0 0.0
    %1963 = vmatprep.subr.mxu0 0.0
    %1964 = vmatpush2.msra.mxu0 0.0
    %1965 = vmatprep.subr.mxu0 0.0
    %1966 = vmatpush2.msra.mxu0 0.0
    %1967 = vmatprep.subr.mxu0 0.0
    %1968 = vmatpush2.msra.mxu0 0.0
    %1969 = vmatprep.mubr.f32.mxu0 0.0
    %1970 = vmatmul.mubr.f32.gmra.mxu0 %v1903
    %v1971 = vpop.f32.mrf.mxu0
    %v1972 = vadd.f32 0.0, %v1971
    %v1973 = vpop.f32.mrf.mxu0
    %1974 = vdwg.mxu0
    %1975 = vrot.lane.b32.xlu0 %v421, 32
    %v1976 = vpop.permute.xlu0 %1975
    %1977 = vrot.lane.b32.xlu0 %v423, 32
    %v1978 = vpop.permute.xlu0 %1977
    %v1982 = vsel %vm444, %v1495, 0
    %1984 = vmatprep.subr.mxu0 0.0
    %1985 = vmatpush1.msra.mxu0 0.0
    %1986 = vmatprep.subr.mxu0 0.0
    %1987 = vmatpush1.msra.mxu0 0.0
    %1988 = vmatprep.subr.mxu0 0.0
    %1989 = vmatpush1.msra.mxu0 0.0
    %1990 = vmatprep.subr.mxu0 0.0
    %1991 = vmatpush1.msra.mxu0 0.0
    %1992 = vmatprep.subr.mxu0 0.0
    %1993 = vmatpush1.msra.mxu0 0.0
    %1994 = vmatprep.subr.mxu0 0.0
    %1995 = vmatpush1.msra.mxu0 0.0
    %1996 = vmatprep.subr.mxu0 0.0
    %1997 = vmatpush1.msra.mxu0 0.0
    %1998 = vmatprep.subr.mxu0 0.0
    %1999 = vmatpush1.msra.mxu0 0.0
    %2000 = vmatprep.subr.mxu0 0.0
    %2001 = vmatpush1.msra.mxu0 0.0
    %2002 = vmatprep.subr.mxu0 0.0
    %2003 = vmatpush1.msra.mxu0 0.0
    %2004 = vmatprep.subr.mxu0 0.0
    %2005 = vmatpush1.msra.mxu0 0.0
    %2006 = vmatprep.subr.mxu0 0.0
    %2007 = vmatpush1.msra.mxu0 0.0
    %2008 = vmatprep.subr.mxu0 0.0
    %2009 = vmatpush1.msra.mxu0 0.0
    %2010 = vmatprep.subr.mxu0 0.0
    %2011 = vmatpush1.msra.mxu0 0.0
    %2012 = vmatprep.subr.mxu0 0.0
    %2013 = vmatpush1.msra.mxu0 %v1978
    %2014 = vmatprep.subr.mxu0 0.0
    %2015 = vmatpush1.msra.mxu0 %v1976
    %2016 = vmatprep.subr.mxu0 0.0
    %2017 = vmatpush2.msra.mxu0 0.0
    %2018 = vmatprep.subr.mxu0 0.0
    %2019 = vmatpush2.msra.mxu0 0.0
    %2020 = vmatprep.subr.mxu0 0.0
    %2021 = vmatpush2.msra.mxu0 0.0
    %2022 = vmatprep.subr.mxu0 0.0
    %2023 = vmatpush2.msra.mxu0 0.0
    %2024 = vmatprep.subr.mxu0 0.0
    %2025 = vmatpush2.msra.mxu0 0.0
    %2026 = vmatprep.subr.mxu0 0.0
    %2027 = vmatpush2.msra.mxu0 0.0
    %2028 = vmatprep.subr.mxu0 0.0
    %2029 = vmatpush2.msra.mxu0 0.0
    %2030 = vmatprep.subr.mxu0 0.0
    %2031 = vmatpush2.msra.mxu0 0.0
    %2032 = vmatprep.subr.mxu0 0.0
    %2033 = vmatpush2.msra.mxu0 0.0
    %2034 = vmatprep.subr.mxu0 0.0
    %2035 = vmatpush2.msra.mxu0 0.0
    %2036 = vmatprep.subr.mxu0 0.0
    %2037 = vmatpush2.msra.mxu0 0.0
    %2038 = vmatprep.subr.mxu0 0.0
    %2039 = vmatpush2.msra.mxu0 0.0
    %2040 = vmatprep.subr.mxu0 0.0
    %2041 = vmatpush2.msra.mxu0 0.0
    %2042 = vmatprep.subr.mxu0 0.0
    %2043 = vmatpush2.msra.mxu0 0.0
    %2044 = vmatprep.subr.mxu0 0.0
    %2045 = vmatpush2.msra.mxu0 0.0
    %2046 = vmatprep.subr.mxu0 0.0
    %2047 = vmatpush2.msra.mxu0 0.0
    %2048 = vmatprep.mubr.f32.mxu0 0.0
    %2049 = vmatmul.mubr.f32.gmra.mxu0 %v1982
    %v2050 = vpop.f32.mrf.mxu0
    %v2051 = vadd.f32 0.0, %v2050
    %v2052 = vpop.f32.mrf.mxu0
    %2053 = vdwg.mxu0
    %2054 = vrot.lane.b32.xlu0 %v425, 32
    %v2055 = vpop.permute.xlu0 %2054
    %2056 = vrot.lane.b32.xlu0 %v427, 32
    %v2057 = vpop.permute.xlu0 %2056
    %v2061 = vsel %vm444, %v1496, 0
    %2063 = vmatprep.subr.mxu0 0.0
    %2064 = vmatpush1.msra.mxu0 0.0
    %2065 = vmatprep.subr.mxu0 0.0
    %2066 = vmatpush1.msra.mxu0 0.0
    %2067 = vmatprep.subr.mxu0 0.0
    %2068 = vmatpush1.msra.mxu0 0.0
    %2069 = vmatprep.subr.mxu0 0.0
    %2070 = vmatpush1.msra.mxu0 0.0
    %2071 = vmatprep.subr.mxu0 0.0
    %2072 = vmatpush1.msra.mxu0 0.0
    %2073 = vmatprep.subr.mxu0 0.0
    %2074 = vmatpush1.msra.mxu0 0.0
    %2075 = vmatprep.subr.mxu0 0.0
    %2076 = vmatpush1.msra.mxu0 0.0
    %2077 = vmatprep.subr.mxu0 0.0
    %2078 = vmatpush1.msra.mxu0 0.0
    %2079 = vmatprep.subr.mxu0 0.0
    %2080 = vmatpush1.msra.mxu0 0.0
    %2081 = vmatprep.subr.mxu0 0.0
    %2082 = vmatpush1.msra.mxu0 0.0
    %2083 = vmatprep.subr.mxu0 0.0
    %2084 = vmatpush1.msra.mxu0 0.0
    %2085 = vmatprep.subr.mxu0 0.0
    %2086 = vmatpush1.msra.mxu0 0.0
    %2087 = vmatprep.subr.mxu0 0.0
    %2088 = vmatpush1.msra.mxu0 0.0
    %2089 = vmatprep.subr.mxu0 0.0
    %2090 = vmatpush1.msra.mxu0 0.0
    %2091 = vmatprep.subr.mxu0 0.0
    %2092 = vmatpush1.msra.mxu0 %v2057
    %2093 = vmatprep.subr.mxu0 0.0
    %2094 = vmatpush1.msra.mxu0 %v2055
    %2095 = vmatprep.subr.mxu0 0.0
    %2096 = vmatpush2.msra.mxu0 0.0
    %2097 = vmatprep.subr.mxu0 0.0
    %2098 = vmatpush2.msra.mxu0 0.0
    %2099 = vmatprep.subr.mxu0 0.0
    %2100 = vmatpush2.msra.mxu0 0.0
    %2101 = vmatprep.subr.mxu0 0.0
    %2102 = vmatpush2.msra.mxu0 0.0
    %2103 = vmatprep.subr.mxu0 0.0
    %2104 = vmatpush2.msra.mxu0 0.0
    %2105 = vmatprep.subr.mxu0 0.0
    %2106 = vmatpush2.msra.mxu0 0.0
    %2107 = vmatprep.subr.mxu0 0.0
    %2108 = vmatpush2.msra.mxu0 0.0
    %2109 = vmatprep.subr.mxu0 0.0
    %2110 = vmatpush2.msra.mxu0 0.0
    %2111 = vmatprep.subr.mxu0 0.0
    %2112 = vmatpush2.msra.mxu0 0.0
    %2113 = vmatprep.subr.mxu0 0.0
    %2114 = vmatpush2.msra.mxu0 0.0
    %2115 = vmatprep.subr.mxu0 0.0
    %2116 = vmatpush2.msra.mxu0 0.0
    %2117 = vmatprep.subr.mxu0 0.0
    %2118 = vmatpush2.msra.mxu0 0.0
    %2119 = vmatprep.subr.mxu0 0.0
    %2120 = vmatpush2.msra.mxu0 0.0
    %2121 = vmatprep.subr.mxu0 0.0
    %2122 = vmatpush2.msra.mxu0 0.0
    %2123 = vmatprep.subr.mxu0 0.0
    %2124 = vmatpush2.msra.mxu0 0.0
    %2125 = vmatprep.subr.mxu0 0.0
    %2126 = vmatpush2.msra.mxu0 0.0
    %2127 = vmatprep.mubr.f32.mxu0 0.0
    %2128 = vmatmul.mubr.f32.gmra.mxu0 %v2061
    %v2129 = vpop.f32.mrf.mxu0
    %v2130 = vadd.f32 0.0, %v2129
    %v2131 = vpop.f32.mrf.mxu0
    %2132 = vdwg.mxu0
    %2133 = vrot.lane.b32.xlu0 %v429, 32
    %v2134 = vpop.permute.xlu0 %2133
    %2135 = vrot.lane.b32.xlu0 %v431, 32
    %v2136 = vpop.permute.xlu0 %2135
    %v2140 = vsel %vm444, %v1497, 0
    %2142 = vmatprep.subr.mxu0 0.0
    %2143 = vmatpush1.msra.mxu0 0.0
    %2144 = vmatprep.subr.mxu0 0.0
    %2145 = vmatpush1.msra.mxu0 0.0
    %2146 = vmatprep.subr.mxu0 0.0
    %2147 = vmatpush1.msra.mxu0 0.0
    %2148 = vmatprep.subr.mxu0 0.0
    %2149 = vmatpush1.msra.mxu0 0.0
    %2150 = vmatprep.subr.mxu0 0.0
    %2151 = vmatpush1.msra.mxu0 0.0
    %2152 = vmatprep.subr.mxu0 0.0
    %2153 = vmatpush1.msra.mxu0 0.0
    %2154 = vmatprep.subr.mxu0 0.0
    %2155 = vmatpush1.msra.mxu0 0.0
    %2156 = vmatprep.subr.mxu0 0.0
    %2157 = vmatpush1.msra.mxu0 0.0
    %2158 = vmatprep.subr.mxu0 0.0
    %2159 = vmatpush1.msra.mxu0 0.0
    %2160 = vmatprep.subr.mxu0 0.0
    %2161 = vmatpush1.msra.mxu0 0.0
    %2162 = vmatprep.subr.mxu0 0.0
    %2163 = vmatpush1.msra.mxu0 0.0
    %2164 = vmatprep.subr.mxu0 0.0
    %2165 = vmatpush1.msra.mxu0 0.0
    %2166 = vmatprep.subr.mxu0 0.0
    %2167 = vmatpush1.msra.mxu0 0.0
    %2168 = vmatprep.subr.mxu0 0.0
    %2169 = vmatpush1.msra.mxu0 0.0
    %2170 = vmatprep.subr.mxu0 0.0
    %2171 = vmatpush1.msra.mxu0 %v2136
    %2172 = vmatprep.subr.mxu0 0.0
    %2173 = vmatpush1.msra.mxu0 %v2134
    %2174 = vmatprep.subr.mxu0 0.0
    %2175 = vmatpush2.msra.mxu0 0.0
    %2176 = vmatprep.subr.mxu0 0.0
    %2177 = vmatpush2.msra.mxu0 0.0
    %2178 = vmatprep.subr.mxu0 0.0
    %2179 = vmatpush2.msra.mxu0 0.0
    %2180 = vmatprep.subr.mxu0 0.0
    %2181 = vmatpush2.msra.mxu0 0.0
    %2182 = vmatprep.subr.mxu0 0.0
    %2183 = vmatpush2.msra.mxu0 0.0
    %2184 = vmatprep.subr.mxu0 0.0
    %2185 = vmatpush2.msra.mxu0 0.0
    %2186 = vmatprep.subr.mxu0 0.0
    %2187 = vmatpush2.msra.mxu0 0.0
    %2188 = vmatprep.subr.mxu0 0.0
    %2189 = vmatpush2.msra.mxu0 0.0
    %2190 = vmatprep.subr.mxu0 0.0
    %2191 = vmatpush2.msra.mxu0 0.0
    %2192 = vmatprep.subr.mxu0 0.0
    %2193 = vmatpush2.msra.mxu0 0.0
    %2194 = vmatprep.subr.mxu0 0.0
    %2195 = vmatpush2.msra.mxu0 0.0
    %2196 = vmatprep.subr.mxu0 0.0
    %2197 = vmatpush2.msra.mxu0 0.0
    %2198 = vmatprep.subr.mxu0 0.0
    %2199 = vmatpush2.msra.mxu0 0.0
    %2200 = vmatprep.subr.mxu0 0.0
    %2201 = vmatpush2.msra.mxu0 0.0
    %2202 = vmatprep.subr.mxu0 0.0
    %2203 = vmatpush2.msra.mxu0 0.0
    %2204 = vmatprep.subr.mxu0 0.0
    %2205 = vmatpush2.msra.mxu0 0.0
    %2206 = vmatprep.mubr.f32.mxu0 0.0
    %2207 = vmatmul.mubr.f32.gmra.mxu0 %v2140
    %v2208 = vpop.f32.mrf.mxu0
    %v2209 = vadd.f32 0.0, %v2208
    %v2210 = vpop.f32.mrf.mxu0
    %2211 = vdwg.mxu0
    %2212 = vrot.lane.b32.xlu0 %v433, 32
    %v2213 = vpop.permute.xlu0 %2212
    %2214 = vrot.lane.b32.xlu0 %v435, 32
    %v2215 = vpop.permute.xlu0 %2214
    %v2219 = vsel %vm444, %v1498, 0
    %2221 = vmatprep.subr.mxu0 0.0
    %2222 = vmatpush1.msra.mxu0 0.0
    %2223 = vmatprep.subr.mxu0 0.0
    %2224 = vmatpush1.msra.mxu0 0.0
    %2225 = vmatprep.subr.mxu0 0.0
    %2226 = vmatpush1.msra.mxu0 0.0
    %2227 = vmatprep.subr.mxu0 0.0
    %2228 = vmatpush1.msra.mxu0 0.0
    %2229 = vmatprep.subr.mxu0 0.0
    %2230 = vmatpush1.msra.mxu0 0.0
    %2231 = vmatprep.subr.mxu0 0.0
    %2232 = vmatpush1.msra.mxu0 0.0
    %2233 = vmatprep.subr.mxu0 0.0
    %2234 = vmatpush1.msra.mxu0 0.0
    %2235 = vmatprep.subr.mxu0 0.0
    %2236 = vmatpush1.msra.mxu0 0.0
    %2237 = vmatprep.subr.mxu0 0.0
    %2238 = vmatpush1.msra.mxu0 0.0
    %2239 = vmatprep.subr.mxu0 0.0
    %2240 = vmatpush1.msra.mxu0 0.0
    %2241 = vmatprep.subr.mxu0 0.0
    %2242 = vmatpush1.msra.mxu0 0.0
    %2243 = vmatprep.subr.mxu0 0.0
    %2244 = vmatpush1.msra.mxu0 0.0
    %2245 = vmatprep.subr.mxu0 0.0
    %2246 = vmatpush1.msra.mxu0 0.0
    %2247 = vmatprep.subr.mxu0 0.0
    %2248 = vmatpush1.msra.mxu0 0.0
    %2249 = vmatprep.subr.mxu0 0.0
    %2250 = vmatpush1.msra.mxu0 %v2215
    %2251 = vmatprep.subr.mxu0 0.0
    %2252 = vmatpush1.msra.mxu0 %v2213
    %2253 = vmatprep.subr.mxu0 0.0
    %2254 = vmatpush2.msra.mxu0 0.0
    %2255 = vmatprep.subr.mxu0 0.0
    %2256 = vmatpush2.msra.mxu0 0.0
    %2257 = vmatprep.subr.mxu0 0.0
    %2258 = vmatpush2.msra.mxu0 0.0
    %2259 = vmatprep.subr.mxu0 0.0
    %2260 = vmatpush2.msra.mxu0 0.0
    %2261 = vmatprep.subr.mxu0 0.0
    %2262 = vmatpush2.msra.mxu0 0.0
    %2263 = vmatprep.subr.mxu0 0.0
    %2264 = vmatpush2.msra.mxu0 0.0
    %2265 = vmatprep.subr.mxu0 0.0
    %2266 = vmatpush2.msra.mxu0 0.0
    %2267 = vmatprep.subr.mxu0 0.0
    %2268 = vmatpush2.msra.mxu0 0.0
    %2269 = vmatprep.subr.mxu0 0.0
    %2270 = vmatpush2.msra.mxu0 0.0
    %2271 = vmatprep.subr.mxu0 0.0
    %2272 = vmatpush2.msra.mxu0 0.0
    %2273 = vmatprep.subr.mxu0 0.0
    %2274 = vmatpush2.msra.mxu0 0.0
    %2275 = vmatprep.subr.mxu0 0.0
    %2276 = vmatpush2.msra.mxu0 0.0
    %2277 = vmatprep.subr.mxu0 0.0
    %2278 = vmatpush2.msra.mxu0 0.0
    %2279 = vmatprep.subr.mxu0 0.0
    %2280 = vmatpush2.msra.mxu0 0.0
    %2281 = vmatprep.subr.mxu0 0.0
    %2282 = vmatpush2.msra.mxu0 0.0
    %2283 = vmatprep.subr.mxu0 0.0
    %2284 = vmatpush2.msra.mxu0 0.0
    %2285 = vmatprep.mubr.f32.mxu0 0.0
    %2286 = vmatmul.mubr.f32.gmra.mxu0 %v2219
    %v2287 = vpop.f32.mrf.mxu0
    %v2288 = vadd.f32 0.0, %v2287
    %v2289 = vpop.f32.mrf.mxu0
    %2290 = vdwg.mxu0
    %2291 = vrot.lane.b32.xlu0 %v437, 32
    %v2292 = vpop.permute.xlu0 %2291
    %2293 = vrot.lane.b32.xlu0 %v439, 32
    %v2294 = vpop.permute.xlu0 %2293
    %v2298 = vsel %vm444, %v1499, 0
    %2300 = vmatprep.subr.mxu0 0.0
    %2301 = vmatpush1.msra.mxu0 0.0
    %2302 = vmatprep.subr.mxu0 0.0
    %2303 = vmatpush1.msra.mxu0 0.0
    %2304 = vmatprep.subr.mxu0 0.0
    %2305 = vmatpush1.msra.mxu0 0.0
    %2306 = vmatprep.subr.mxu0 0.0
    %2307 = vmatpush1.msra.mxu0 0.0
    %2308 = vmatprep.subr.mxu0 0.0
    %2309 = vmatpush1.msra.mxu0 0.0
    %2310 = vmatprep.subr.mxu0 0.0
    %2311 = vmatpush1.msra.mxu0 0.0
    %2312 = vmatprep.subr.mxu0 0.0
    %2313 = vmatpush1.msra.mxu0 0.0
    %2314 = vmatprep.subr.mxu0 0.0
    %2315 = vmatpush1.msra.mxu0 0.0
    %2316 = vmatprep.subr.mxu0 0.0
    %2317 = vmatpush1.msra.mxu0 0.0
    %2318 = vmatprep.subr.mxu0 0.0
    %2319 = vmatpush1.msra.mxu0 0.0
    %2320 = vmatprep.subr.mxu0 0.0
    %2321 = vmatpush1.msra.mxu0 0.0
    %2322 = vmatprep.subr.mxu0 0.0
    %2323 = vmatpush1.msra.mxu0 0.0
    %2324 = vmatprep.subr.mxu0 0.0
    %2325 = vmatpush1.msra.mxu0 0.0
    %2326 = vmatprep.subr.mxu0 0.0
    %2327 = vmatpush1.msra.mxu0 0.0
    %2328 = vmatprep.subr.mxu0 0.0
    %2329 = vmatpush1.msra.mxu0 %v2294
    %2330 = vmatprep.subr.mxu0 0.0
    %2331 = vmatpush1.msra.mxu0 %v2292
    %2332 = vmatprep.subr.mxu0 0.0
    %2333 = vmatpush2.msra.mxu0 0.0
    %2334 = vmatprep.subr.mxu0 0.0
    %2335 = vmatpush2.msra.mxu0 0.0
    %2336 = vmatprep.subr.mxu0 0.0
    %2337 = vmatpush2.msra.mxu0 0.0
    %2338 = vmatprep.subr.mxu0 0.0
    %2339 = vmatpush2.msra.mxu0 0.0
    %2340 = vmatprep.subr.mxu0 0.0
    %2341 = vmatpush2.msra.mxu0 0.0
    %2342 = vmatprep.subr.mxu0 0.0
    %2343 = vmatpush2.msra.mxu0 0.0
    %2344 = vmatprep.subr.mxu0 0.0
    %2345 = vmatpush2.msra.mxu0 0.0
    %2346 = vmatprep.subr.mxu0 0.0
    %2347 = vmatpush2.msra.mxu0 0.0
    %2348 = vmatprep.subr.mxu0 0.0
    %2349 = vmatpush2.msra.mxu0 0.0
    %2350 = vmatprep.subr.mxu0 0.0
    %2351 = vmatpush2.msra.mxu0 0.0
    %2352 = vmatprep.subr.mxu0 0.0
    %2353 = vmatpush2.msra.mxu0 0.0
    %2354 = vmatprep.subr.mxu0 0.0
    %2355 = vmatpush2.msra.mxu0 0.0
    %2356 = vmatprep.subr.mxu0 0.0
    %2357 = vmatpush2.msra.mxu0 0.0
    %2358 = vmatprep.subr.mxu0 0.0
    %2359 = vmatpush2.msra.mxu0 0.0
    %2360 = vmatprep.subr.mxu0 0.0
    %2361 = vmatpush2.msra.mxu0 0.0
    %2362 = vmatprep.subr.mxu0 0.0
    %2363 = vmatpush2.msra.mxu0 0.0
    %2364 = vmatprep.mubr.f32.mxu0 0.0
    %2365 = vmatmul.mubr.f32.gmra.mxu0 %v2298
    %v2366 = vpop.f32.mrf.mxu0
    %v2367 = vadd.f32 0.0, %v2366
    %v2368 = vpop.f32.mrf.mxu0
    %2369 = vdwg.mxu0
    %2370 = vrot.lane.b32.xlu0 %v441, 32
    %v2371 = vpop.permute.xlu0 %2370
    %2372 = vrot.lane.b32.xlu0 %v443, 32
    %v2373 = vpop.permute.xlu0 %2372
    %v2377 = vsel %vm444, %v1500, 0
    %2379 = vmatprep.subr.mxu0 0.0
    %2380 = vmatpush1.msra.mxu0 0.0
    %2381 = vmatprep.subr.mxu0 0.0
    %2382 = vmatpush1.msra.mxu0 0.0
    %2383 = vmatprep.subr.mxu0 0.0
    %2384 = vmatpush1.msra.mxu0 0.0
    %2385 = vmatprep.subr.mxu0 0.0
    %2386 = vmatpush1.msra.mxu0 0.0
    %2387 = vmatprep.subr.mxu0 0.0
    %2388 = vmatpush1.msra.mxu0 0.0
    %2389 = vmatprep.subr.mxu0 0.0
    %2390 = vmatpush1.msra.mxu0 0.0
    %2391 = vmatprep.subr.mxu0 0.0
    %2392 = vmatpush1.msra.mxu0 0.0
    %2393 = vmatprep.subr.mxu0 0.0
    %2394 = vmatpush1.msra.mxu0 0.0
    %2395 = vmatprep.subr.mxu0 0.0
    %2396 = vmatpush1.msra.mxu0 0.0
    %2397 = vmatprep.subr.mxu0 0.0
    %2398 = vmatpush1.msra.mxu0 0.0
    %2399 = vmatprep.subr.mxu0 0.0
    %2400 = vmatpush1.msra.mxu0 0.0
    %2401 = vmatprep.subr.mxu0 0.0
    %2402 = vmatpush1.msra.mxu0 0.0
    %2403 = vmatprep.subr.mxu0 0.0
    %2404 = vmatpush1.msra.mxu0 0.0
    %2405 = vmatprep.subr.mxu0 0.0
    %2406 = vmatpush1.msra.mxu0 0.0
    %2407 = vmatprep.subr.mxu0 0.0
    %2408 = vmatpush1.msra.mxu0 %v2373
    %2409 = vmatprep.subr.mxu0 0.0
    %2410 = vmatpush1.msra.mxu0 %v2371
    %2411 = vmatprep.subr.mxu0 0.0
    %2412 = vmatpush2.msra.mxu0 0.0
    %2413 = vmatprep.subr.mxu0 0.0
    %2414 = vmatpush2.msra.mxu0 0.0
    %2415 = vmatprep.subr.mxu0 0.0
    %2416 = vmatpush2.msra.mxu0 0.0
    %2417 = vmatprep.subr.mxu0 0.0
    %2418 = vmatpush2.msra.mxu0 0.0
    %2419 = vmatprep.subr.mxu0 0.0
    %2420 = vmatpush2.msra.mxu0 0.0
    %2421 = vmatprep.subr.mxu0 0.0
    %2422 = vmatpush2.msra.mxu0 0.0
    %2423 = vmatprep.subr.mxu0 0.0
    %2424 = vmatpush2.msra.mxu0 0.0
    %2425 = vmatprep.subr.mxu0 0.0
    %2426 = vmatpush2.msra.mxu0 0.0
    %2427 = vmatprep.subr.mxu0 0.0
    %2428 = vmatpush2.msra.mxu0 0.0
    %2429 = vmatprep.subr.mxu0 0.0
    %2430 = vmatpush2.msra.mxu0 0.0
    %2431 = vmatprep.subr.mxu0 0.0
    %2432 = vmatpush2.msra.mxu0 0.0
    %2433 = vmatprep.subr.mxu0 0.0
    %2434 = vmatpush2.msra.mxu0 0.0
    %2435 = vmatprep.subr.mxu0 0.0
    %2436 = vmatpush2.msra.mxu0 0.0
    %2437 = vmatprep.subr.mxu0 0.0
    %2438 = vmatpush2.msra.mxu0 0.0
    %2439 = vmatprep.subr.mxu0 0.0
    %2440 = vmatpush2.msra.mxu0 0.0
    %2441 = vmatprep.subr.mxu0 0.0
    %2442 = vmatpush2.msra.mxu0 0.0
    %2443 = vmatprep.mubr.f32.mxu0 0.0
    %2444 = vmatmul.mubr.f32.gmra.mxu0 %v2377
    %v2445 = vpop.f32.mrf.mxu0
    %v2446 = vadd.f32 0.0, %v2445
    %v2447 = vpop.f32.mrf.mxu0
    %2448 = vdwg.mxu0
    %2451 = vrot.lane.b32.xlu0 %v1735, 16
    %v2452 = vpop.permute.xlu0 %2451
    %2453 = vrot.lane.b32.xlu0 %v1814, 16
    %v2454 = vpop.permute.xlu0 %2453
    %2459 = vrot.lane.b32.xlu0 %v1893, 32
    %v2460 = vpop.permute.xlu0 %2459
    %2461 = vrot.lane.b32.xlu0 %v1972, 32
    %v2462 = vpop.permute.xlu0 %2461
    %2467 = vrot.lane.b32.xlu0 %v2051, 48
    %v2468 = vpop.permute.xlu0 %2467
    %2469 = vrot.lane.b32.xlu0 %v2130, 48
    %v2470 = vpop.permute.xlu0 %2469
    %2475 = vrot.lane.b32.xlu0 %v2209, 64
    %v2476 = vpop.permute.xlu0 %2475
    %2477 = vrot.lane.b32.xlu0 %v2288, 64
    %v2478 = vpop.permute.xlu0 %2477
    %2483 = vrot.lane.b32.xlu0 %v2367, 80
    %v2484 = vpop.permute.xlu0 %2483
    %2485 = vrot.lane.b32.xlu0 %v2446, 80
    %v2486 = vpop.permute.xlu0 %2485
    %v2489 = vsel %vm444, %v1577, %v2452
    %v2490 = vsel %vm444, %v1656, %v2454
    %vm2491 = vcmask 261120
    %v2492 = vsel %vm2491, %v2489, %v2460
    %v2493 = vsel %vm2491, %v2490, %v2462
    %vm2494 = vcmask 392192
    %v2495 = vsel %vm2494, %v2492, %v2468
    %v2496 = vsel %vm2494, %v2493, %v2470
    %vm2497 = vcmask 523264
    %v2498 = vsel %vm2497, %v2495, %v2476
    %v2499 = vsel %vm2497, %v2496, %v2478
    %vm2500 = vcmask 654336
    %v2501 = vsel %vm2500, %v2498, %v2484
    %v2502 = vsel %vm2500, %v2499, %v2486
    %v2503 = vld [vmem:[#allocation10] sm:$0xff]
    %v2504 = vld [vmem:[#allocation10 + $0x8] sm:$0xff]
    %v2505 = vld [vmem:[#allocation10 + $0x10] sm:$0xff]
    %v2506 = vld [vmem:[#allocation10 + $0x18] sm:$0xff]
    %v2507 = vld [vmem:[#allocation10 + $0x20] sm:$0xff]
    %v2508 = vld [vmem:[#allocation10 + $0x28] sm:$0xff]
    %v2509 = vld [vmem:[#allocation10 + $0x30] sm:$0xff]
    %v2510 = vld [vmem:[#allocation10 + $0x38] sm:$0xff]
    %v2511 = vld [vmem:[#allocation10 + $0x40] sm:$0xff]
    %v2512 = vld [vmem:[#allocation10 + $0x48] sm:$0xff]
    %v2513 = vld [vmem:[#allocation10 + $0x50] sm:$0xff]
    %v2514 = vld [vmem:[#allocation10 + $0x58] sm:$0xff]
    %v2515 = vld [vmem:[%s7] sm:$0x1]
    %v2517 = vlaneseq
    %v2518 = vshrl.u32 %v2517, 7
    %v2519 = vsub.s32 0, %v2518
    %v2520 = vrot.slane %v2515, %v2519
    %v2523 = vsel %vm123, %v2501, 0
    %v2526 = vsel %vm123, %v2502, 0
    %2528 = vmatprep.subr.mxu0 0.0
    %2529 = vmatpush1.msra.mxu0 0.0
    %2530 = vmatprep.subr.mxu0 0.0
    %2531 = vmatpush1.msra.mxu0 0.0
    %2532 = vmatprep.subr.mxu0 0.0
    %2533 = vmatpush1.msra.mxu0 0.0
    %2534 = vmatprep.subr.mxu0 0.0
    %2535 = vmatpush1.msra.mxu0 0.0
    %2536 = vmatprep.subr.mxu0 0.0
    %2537 = vmatpush1.msra.mxu0 %v2514
    %2538 = vmatprep.subr.mxu0 0.0
    %2539 = vmatpush1.msra.mxu0 %v2513
    %2540 = vmatprep.subr.mxu0 0.0
    %2541 = vmatpush1.msra.mxu0 %v2512
    %2542 = vmatprep.subr.mxu0 0.0
    %2543 = vmatpush1.msra.mxu0 %v2511
    %2544 = vmatprep.subr.mxu0 0.0
    %2545 = vmatpush1.msra.mxu0 %v2510
    %2546 = vmatprep.subr.mxu0 0.0
    %2547 = vmatpush1.msra.mxu0 %v2509
    %2548 = vmatprep.subr.mxu0 0.0
    %2549 = vmatpush1.msra.mxu0 %v2508
    %2550 = vmatprep.subr.mxu0 0.0
    %2551 = vmatpush1.msra.mxu0 %v2507
    %2552 = vmatprep.subr.mxu0 0.0
    %2553 = vmatpush1.msra.mxu0 %v2506
    %2554 = vmatprep.subr.mxu0 0.0
    %2555 = vmatpush1.msra.mxu0 %v2505
    %2556 = vmatprep.subr.mxu0 0.0
    %2557 = vmatpush1.msra.mxu0 %v2504
    %2558 = vmatprep.subr.mxu0 0.0
    %2559 = vmatpush1.msra.mxu0 %v2503
    %2560 = vmatprep.subr.mxu0 0.0
    %2561 = vmatpush2.msra.mxu0 0.0
    %2562 = vmatprep.subr.mxu0 0.0
    %2563 = vmatpush2.msra.mxu0 0.0
    %2564 = vmatprep.subr.mxu0 0.0
    %2565 = vmatpush2.msra.mxu0 0.0
    %2566 = vmatprep.subr.mxu0 0.0
    %2567 = vmatpush2.msra.mxu0 0.0
    %2568 = vmatprep.subr.mxu0 0.0
    %2569 = vmatpush2.msra.mxu0 0.0
    %2570 = vmatprep.subr.mxu0 0.0
    %2571 = vmatpush2.msra.mxu0 0.0
    %2572 = vmatprep.subr.mxu0 0.0
    %2573 = vmatpush2.msra.mxu0 0.0
    %2574 = vmatprep.subr.mxu0 0.0
    %2575 = vmatpush2.msra.mxu0 0.0
    %2576 = vmatprep.subr.mxu0 0.0
    %2577 = vmatpush2.msra.mxu0 0.0
    %2578 = vmatprep.subr.mxu0 0.0
    %2579 = vmatpush2.msra.mxu0 0.0
    %2580 = vmatprep.subr.mxu0 0.0
    %2581 = vmatpush2.msra.mxu0 0.0
    %2582 = vmatprep.subr.mxu0 0.0
    %2583 = vmatpush2.msra.mxu0 0.0
    %2584 = vmatprep.subr.mxu0 0.0
    %2585 = vmatpush2.msra.mxu0 0.0
    %2586 = vmatprep.subr.mxu0 0.0
    %2587 = vmatpush2.msra.mxu0 0.0
    %2588 = vmatprep.subr.mxu0 0.0
    %2589 = vmatpush2.msra.mxu0 0.0
    %2590 = vmatprep.subr.mxu0 0.0
    %2591 = vmatpush2.msra.mxu0 0.0
    %2592 = vmatprep.mubr.f32.mxu0 0.0
    %2593 = vmatmul.mubr.f32.gmra.mxu0 %v2523
    %v2594 = vpop.f32.mrf.mxu0
    %v2595 = vadd.f32 %v2520, %v2594
    %v2596 = vpop.f32.mrf.mxu0
    %2597 = vmatprep.mubr.f32.mxu0 0.0
    %2598 = vmatmul.mubr.f32.gmra.mxu0 %v2526
    %v2599 = vpop.f32.mrf.mxu0
    %v2600 = vadd.f32 %v2520, %v2599
    %v2601 = vpop.f32.mrf.mxu0
    %2602 = vdwg.mxu0
    %2603 = vst.msk [vmem:[#allocation11] sm:$0xff] %vm123, %v2595
    %2604 = vst.msk [vmem:[#allocation11 + $0x8] sm:$0xff] %vm123, %v2600
    // Predicated region
    $region54: #{tpu_custom_call.1} parent=1 // pred_check
      _
    $region55: #{tpu_custom_call.1} parent=1 // pred_check_branch
      %2606 = sbr.rel (0) target = $region57
    $region56: #{tpu_custom_call.1} parent=1 // pred_region
      %s2608 = ssub.s32 256, 256
      %2609 = vsyncadd [#allocation4], %s2608
      %s2610 = sshll.u32 [#allocation11], 4
      %s2611 = int_to_ptr.vmem [resolvable:$true] %s2610
      %2616 = dma.vmem_to_hbm [thread:$0]  %s2611, 256, %s8, [#allocation4], 128, 128, 8
    $region57: #{tpu_custom_call.1} parent=1 // pred_fallthru
      _
    // Predicated region
    $region58: #{tpu_custom_call.1} parent=1 // pred_check
      _
    $region59: #{tpu_custom_call.1} parent=1 // pred_check_branch
      %2618 = sbr.rel (0) target = $region61
    $region60: #{tpu_custom_call.1} parent=1 // pred_region
      %2619 = dma.done [#allocation4], 256
    $region61: #{tpu_custom_call.1} parent=1 // pred_fallthru
      _
    %2620 = vsyncpa [#allocation3], 1
    %2621 = vsyncpa [#allocation6], 1
    %2622 = vsyncpa [#allocation9], 1
    %2623 = vsyncpa [#allocation4], 1

</llo_original>
